<compile_context>
chip_gen: v7x
topology: tpu7x:2x2x1
jax: 0.10.0
libtpu: 0.0.40
codegen_flags: <defaults>
</compile_context>

<pallas_src>
import jax
import jax.numpy as jnp
from jax import lax
from jax.experimental import pallas as pl
from jax.experimental.pallas import tpu as pltpu


LANE = 128


def _silu(v):
    return v * jax.nn.sigmoid(v)


def _softplus(v):
    return jnp.maximum(v, 0.0) + jnp.log(1.0 + jnp.exp(-jnp.abs(v)))


def _bdot(a, b):
    """bf16-operand matmul with f32 accumulation (MXU-native)."""
    return jnp.dot(a.astype(jnp.bfloat16), b.astype(jnp.bfloat16),
                   preferred_element_type=jnp.float32)


def _dt_projection(dt_low, w_dt, b_dt):
    """dt_proj + softplus.  For tiny dt_rank the low-rank contraction is
    dt_rank broadcast-FMAs on the VPU (exact f32); larger ranks use the MXU."""
    r = w_dt.shape[0]
    if r <= 8:
        pre = dt_low[..., 0:1] * w_dt[0:1, :]
        for ri in range(1, r):
            pre = pre + dt_low[..., ri:ri + 1] * w_dt[ri:ri + 1, :]
    else:
        pre = _bdot(dt_low, w_dt)
    return _softplus(pre + b_dt)


def _pick_scan_chunk(L, max_chunk=8):
    for c in range(min(L, max_chunk), 0, -1):
        if L % c == 0:
            return c
    return L


PARAM_ORDER = ["w_in", "conv_w", "conv_b", "w_x", "w_dt", "b_dt",
               "A_sd", "D", "w_out"]


def mamba_block_kernel(x_ref, w_in_ref, conv_w_ref, conv_b_ref, w_x_ref,
                       w_dt_ref, b_dt_ref, A_ref, D_ref, w_out_ref,
                       out_ref, y_sc):
    f32 = jnp.float32
    bb, L, d_model = x_ref.shape                    # block_b, seq_len, d_model
    Lb = bb * L                                     # rows per grid step
    K, d_inner = conv_w_ref.shape
    n = A_ref.shape[0]                              # d_state
    dt_rank = w_dt_ref.shape[0]

    x = x_ref[...].reshape(Lb, d_model)             # bf16 rows (batched for MXU)

    # ---- fused in_proj: [x_path | res_path] (bf16 MXU, f32 accumulation) ----
    xz = _bdot(x, w_in_ref[...])                    # (Lb, 2*d_inner) f32
    x_in = xz[:, :d_inner]
    res = xz[:, d_inner:]

    # ---- causal depthwise conv1d: K taps as XLU rolls + VPU row mask --------
    # conv[t] = b + sum_j w[K-1-j] * x_in[t-j]   (per sequence; x_in[<0] == 0)
    cw = conv_w_ref[...]                            # (K, d_inner)
    t_idx = lax.broadcasted_iota(jnp.int32, (Lb, d_inner), 0) % L
    conv = x_in * cw[K - 1:K, :] + conv_b_ref[...]
    for j in range(1, K):                           # static unroll over taps
        shifted = pltpu.roll(x_in, shift=j, axis=0)          # rows move down by j
        shifted = jnp.where(t_idx >= j, shifted, 0.0)        # no cross-sequence leak
        conv = conv + shifted * cw[K - 1 - j:K - j, :]
    u = _silu(conv)                                 # (Lb, d_inner)

    # ---- fused, lane-padded x_proj -> (delta_low | B | C) -------------------
    x_dbl = _bdot(u, w_x_ref[...])                  # (Lb, 128*k) f32, dense lanes
    dt_low = x_dbl[:, :dt_rank]                     # (Lb, dt_rank)
    delta = _dt_projection(dt_low, w_dt_ref[...], b_dt_ref[...])   # (Lb, d_inner)

    # One XLU transpose of the dense slab moves B/C from lanes to sublanes
    # for the whole row block (no per-step relayouts, no MXU identity matmul).
    xdbl_t = jnp.transpose(x_dbl)                   # (128*k, Lb)
    b_rows = xdbl_t[dt_rank:dt_rank + n, :]         # (n, Lb)
    c_rows = xdbl_t[dt_rank + n:dt_rank + 2 * n, :] # (n, Lb)

    A_sd = A_ref[...]                               # (n, d_inner) == -exp(A_log).T
    du = delta * u                                  # (Lb, d_inner)

    # ---- selective scan ------------------------------------------------------
    # Dense (n, d_inner) state; exp() hoisted per chunk (one EUP burst), y rows
    # written straight to VMEM scratch (no sublane concat, bounded live set).
    Lc = _pick_scan_chunk(L)
    for b_i in range(bb):                           # sequences never share state
        h = jnp.zeros((n, d_inner), f32)
        for c in range(L // Lc):
            base = b_i * L + c * Lc
            dA_c = jnp.exp(delta[base:base + Lc, :][:, None, :]
                           * A_sd[None, :, :])      # (Lc, n, d_inner)
            for t in range(Lc):                     # static unroll within chunk
                g = base + t
                h = dA_c[t] * h + du[g:g + 1, :] * b_rows[:, g:g + 1]
                y_sc[g:g + 1, :] = jnp.sum(h * c_rows[:, g:g + 1],
                                           axis=0, keepdims=True)

    # ---- skip term, gate, out_proj -------------------------------------------
    y = y_sc[...] + u * D_ref[...]
    y = y * _silu(res)
    out = _bdot(y, w_out_ref[...])                  # (Lb, d_model) f32
    out_ref[...] = out.reshape(bb, L, d_model).astype(out_ref.dtype)


def _vmem_limit_bytes():
    cap = None
    try:
        cap = getattr(pltpu.get_tpu_info(), "vmem_capacity_bytes", None)
    except Exception:
        cap = None
    if not cap:
        cap = 64 * 1024 * 1024          # assume the smallest (v7x per-TC) VMEM
    # ~25% headroom for the pipeliner's double buffers / compiler scratch.
    return min(96 * 1024 * 1024, int(cap) * 3 // 4)


def _pick_block_b(b, L, target_rows=256):
    """Batch elements per grid step: enough rows to feed the MXU, while
    keeping >=2 grid steps so both v7x TensorCores get work."""
    best = 1
    for cand in range(1, b + 1):
        if b % cand:
            continue
        if cand * L > target_rows:
            break
        if b // cand >= 2:
            best = cand
    return best


def mamba_block_forward(x, params, block_b=None):
    b, L, d_model = x.shape
    if block_b is None:
        block_b = _pick_block_b(b, L)
    assert b % block_b == 0
    ordered = [params[k] for k in PARAM_ORDER]
    d_inner = params["conv_w"].shape[1]

    # Activations are truncated to bf16 on the MXU anyway: ship bf16 over DMA.
    x_bf16 = x.astype(jnp.bfloat16)

    in_specs = [pl.BlockSpec((block_b, L, d_model), lambda i: (i, 0, 0))]
    for p in ordered:
        in_specs.append(pl.BlockSpec(p.shape, lambda i: (0, 0)))

    grid_spec = pltpu.PrefetchScalarGridSpec(
        num_scalar_prefetch=0,
        grid=(b // block_b,),
        in_specs=in_specs,
        out_specs=pl.BlockSpec((block_b, L, d_model), lambda i: (i, 0, 0)),
        scratch_shapes=[pltpu.VMEM((block_b * L, d_inner), jnp.float32)],
    )
    return pl.pallas_call(
        mamba_block_kernel,
        out_shape=jax.ShapeDtypeStruct((b, L, d_model), jnp.float32),
        grid_spec=grid_spec,
        compiler_params=pltpu.CompilerParams(
            dimension_semantics=("parallel",),
            vmem_limit_bytes=_vmem_limit_bytes()),
    )(x_bf16, *ordered)


def init_params(key, d_model, d_inner, d_state, dt_rank, d_conv):
    ks = jax.random.split(key, 7)

    def unif(k, shape, fan_in):
        s = 1.0 / (fan_in ** 0.5)
        return jax.random.uniform(k, shape, jnp.float32, -s, s)

    bf16 = jnp.bfloat16
    w_in = unif(ks[0], (d_model, 2 * d_inner), d_model).astype(bf16)
    conv_w = unif(ks[1], (d_conv, d_inner), d_conv)
    conv_b = unif(ks[2], (1, d_inner), d_conv)

    # x_proj weights, zero-padded so the fused output width (dt_rank + 2n) is
    # a multiple of 128 lanes (dense vst, no remainder lane tiles).
    w_x_cols = dt_rank + 2 * d_state
    w_x_pad = ((w_x_cols + LANE - 1) // LANE) * LANE
    w_x = unif(ks[3], (d_inner, w_x_cols), d_inner)
    w_x = jnp.pad(w_x, ((0, 0), (0, w_x_pad - w_x_cols))).astype(bf16)

    w_dt = unif(ks[4], (dt_rank, d_inner), dt_rank)      # f32: used on the VPU
    b_dt = unif(ks[5], (1, d_inner), dt_rank)
    w_out = unif(ks[6], (d_inner, d_model), d_inner).astype(bf16)

    A_log = jnp.log(jnp.broadcast_to(
        jnp.arange(1, d_state + 1, dtype=jnp.float32)[None, :],
        (d_inner, d_state)))
    # Hoisted out of the kernel: A = -exp(A_log), stored (d_state, d_inner).
    A_sd = jnp.transpose(-jnp.exp(A_log))
    D = jnp.ones((1, d_inner), jnp.float32)

    return {
        "w_in": w_in, "conv_w": conv_w, "conv_b": conv_b,
        "w_x": w_x, "w_dt": w_dt, "b_dt": b_dt,
        "A_sd": A_sd, "D": D, "w_out": w_out,
    }


def mamba_block_ref(x, w):
    """Pure-JAX reference matching the PyTorch forward semantics (same bf16
    matmul operands / f32 accumulation as the kernel)."""
    L = x.shape[1]
    K, d_inner = w["conv_w"].shape
    dt_rank = w["w_dt"].shape[0]
    n = w["A_sd"].shape[0]

    xz = _bdot(x, w["w_in"])
    x_in, res = xz[..., :d_inner], xz[..., d_inner:]
    xp = jnp.pad(x_in, ((0, 0), (K - 1, 0), (0, 0)))
    conv = sum(xp[:, k:k + L, :] * w["conv_w"][k] for k in range(K)) + w["conv_b"][0]
    u = _silu(conv)

    x_dbl = _bdot(u, w["w_x"])
    dt_low = x_dbl[..., :dt_rank]
    Bm = x_dbl[..., dt_rank:dt_rank + n]
    Cm = x_dbl[..., dt_rank + n:dt_rank + 2 * n]
    delta = _dt_projection(dt_low, w["w_dt"], w["b_dt"])

    A = jnp.transpose(w["A_sd"])                          # (d_inner, n)
    dA = jnp.exp(delta[..., None] * A)                    # (b, L, d_inner, n)
    dBu = (delta * u)[..., None] * Bm[:, :, None, :]      # (b, L, d_inner, n)

    def step(h, inp):
        dA_t, dBu_t, C_t = inp
        h = dA_t * h + dBu_t
        y_t = jnp.sum(h * C_t[:, None, :], axis=-1)
        return h, y_t

    h0 = jnp.zeros((x.shape[0], d_inner, n), jnp.float32)
    _, ys = lax.scan(step, h0, (jnp.swapaxes(dA, 0, 1),
                                jnp.swapaxes(dBu, 0, 1),
                                jnp.swapaxes(Cm, 0, 1)))
    y = jnp.swapaxes(ys, 0, 1)
    y = y + u * w["D"][0]
    y = y * _silu(res)
    return _bdot(y, w["w_out"])


if __name__ == "__main__":
    # ModelArgs(d_model=32, d_state=16, expand=2, d_conv=4) -> d_inner=64, dt_rank=2
    d_model, d_state, expand, d_conv = 32, 16, 2, 4
    d_inner = expand * d_model
    dt_rank = -(-d_model // 16)
    batch, seq_len = 2, 8

    key = jax.random.PRNGKey(0)
    kx, kp = jax.random.split(key)
    params = init_params(kp, d_model, d_inner, d_state, dt_rank, d_conv)
    x = jax.random.normal(kx, (batch, seq_len, d_model), jnp.float32)

    out = jax.block_until_ready(mamba_block_forward(x, params))
    ref = mamba_block_ref(x, params)

    assert out.shape == (batch, seq_len, d_model)
    if not jnp.allclose(out, ref, atol=1e-2, rtol=1e-2):
        raise AssertionError(
            f"mismatch vs reference, max abs diff = {float(jnp.max(jnp.abs(out - ref)))}")
    print("KERNEL_OK")
</pallas_src>

<mosaic_0001>
module attributes {stable_mosaic.version = 11 : i64} {
  func.func @mamba_block_kernel(%arg0: i32, %arg1: memref<1x8x32xbf16, #tpu.memory_space<vmem>>, %arg2: memref<32x128xbf16, #tpu.memory_space<vmem>>, %arg3: memref<4x64xf32, #tpu.memory_space<vmem>>, %arg4: memref<1x64xf32, #tpu.memory_space<vmem>>, %arg5: memref<64x128xbf16, #tpu.memory_space<vmem>>, %arg6: memref<2x64xf32, #tpu.memory_space<vmem>>, %arg7: memref<1x64xf32, #tpu.memory_space<vmem>>, %arg8: memref<16x64xf32, #tpu.memory_space<vmem>>, %arg9: memref<1x64xf32, #tpu.memory_space<vmem>>, %arg10: memref<64x32xbf16, #tpu.memory_space<vmem>>, %arg11: memref<1x8x32xf32, #tpu.memory_space<vmem>>, %arg12: memref<8x64xf32, #tpu.memory_space<vmem>>) attributes {dimension_semantics = [#tpu.dimension_semantics<parallel>], iteration_bounds = array<i64: 2>, scalar_prefetch = 0 : i64, scratch_operands = 1 : i64, tpu.core_type = #tpu.core_type<tc>, window_params = [{transform_indices = @transform_0, window_bounds = array<i64: 1, 8, 32>}, {pipeline_mode = #tpu.pipeline_mode<synchronous>, transform_indices = @transform_1, window_bounds = array<i64: 32, 128>}, {pipeline_mode = #tpu.pipeline_mode<synchronous>, transform_indices = @transform_2, window_bounds = array<i64: 4, 64>}, {pipeline_mode = #tpu.pipeline_mode<synchronous>, transform_indices = @transform_3, window_bounds = array<i64: 1, 64>}, {pipeline_mode = #tpu.pipeline_mode<synchronous>, transform_indices = @transform_4, window_bounds = array<i64: 64, 128>}, {pipeline_mode = #tpu.pipeline_mode<synchronous>, transform_indices = @transform_5, window_bounds = array<i64: 2, 64>}, {pipeline_mode = #tpu.pipeline_mode<synchronous>, transform_indices = @transform_6, window_bounds = array<i64: 1, 64>}, {pipeline_mode = #tpu.pipeline_mode<synchronous>, transform_indices = @transform_7, window_bounds = array<i64: 16, 64>}, {pipeline_mode = #tpu.pipeline_mode<synchronous>, transform_indices = @transform_8, window_bounds = array<i64: 1, 64>}, {pipeline_mode = #tpu.pipeline_mode<synchronous>, transform_indices = @transform_9, window_bounds = array<i64: 64, 32>}, {transform_indices = @transform_10, window_bounds = array<i64: 1, 8, 32>}]} {
    %c0 = arith.constant 0 : index
    %c0_0 = arith.constant 0 : index
    %c0_1 = arith.constant 0 : index
    %0 = vector.load %arg1[%c0, %c0_0, %c0_1] : memref<1x8x32xbf16, #tpu.memory_space<vmem>>, vector<1x8x32xbf16>
    %1 = vector.shape_cast %0 : vector<1x8x32xbf16> to vector<8x32xbf16>
    %c0_2 = arith.constant 0 : index
    %c0_3 = arith.constant 0 : index
    %2 = vector.load %arg2[%c0_2, %c0_3] : memref<32x128xbf16, #tpu.memory_space<vmem>>, vector<32x128xbf16>
    %cst = arith.constant dense<0.000000e+00> : vector<8x128xf32>
    %3 = tpu.matmul %1, %2, %cst {dimension_numbers = #tpu.dot_dimension_numbers<[1], [0], [0], [1], [0, 0, 1, 1], [], []>} : vector<8x32xbf16>, vector<32x128xbf16>, vector<8x128xf32> -> vector<8x128xf32>
    %4 = vector.extract_strided_slice %3 {offsets = [0, 0], sizes = [8, 64], strides = [1, 1]} : vector<8x128xf32> to vector<8x64xf32>
    %5 = vector.extract_strided_slice %3 {offsets = [0, 64], sizes = [8, 64], strides = [1, 1]} : vector<8x128xf32> to vector<8x64xf32>
    %c0_4 = arith.constant 0 : index
    %c0_5 = arith.constant 0 : index
    %6 = vector.load %arg3[%c0_4, %c0_5] : memref<4x64xf32, #tpu.memory_space<vmem>>, vector<4x64xf32>
    %7 = tpu.iota {dimensions = array<i32: 0>} : vector<8x64xi32>
    %c8_i32 = arith.constant 8 : i32
    %c0_i32 = arith.constant 0 : i32
    %8 = arith.cmpi eq, %c8_i32, %c0_i32 : i32
    %c1_i32 = arith.constant 1 : i32
    %9 = arith.select %8, %c1_i32, %c8_i32 : i32
    %10 = vector.broadcast %9 : i32 to vector<8x64xi32>
    %11 = arith.remsi %7, %10 : vector<8x64xi32>
    %c0_i32_6 = arith.constant 0 : i32
    %12 = vector.broadcast %c0_i32_6 : i32 to vector<8x64xi32>
    %13 = arith.cmpi ne, %11, %12 : vector<8x64xi32>
    %c0_i32_7 = arith.constant 0 : i32
    %14 = vector.broadcast %c0_i32_7 : i32 to vector<8x64xi32>
    %15 = arith.cmpi slt, %11, %14 : vector<8x64xi32>
    %c0_i32_8 = arith.constant 0 : i32
    %16 = arith.cmpi slt, %9, %c0_i32_8 : i32
    %17 = vector.broadcast %16 : i1 to vector<8x64xi1>
    %18 = vector.broadcast %17 : vector<8x64xi1> to vector<8x64xi1>
    %19 = arith.xori %15, %18 : vector<8x64xi1>
    %20 = arith.andi %19, %13 : vector<8x64xi1>
    %21 = vector.broadcast %9 : i32 to vector<8x64xi32>
    %22 = arith.addi %11, %21 : vector<8x64xi32>
    %23 = arith.select %20, %22, %11 : vector<8x64xi1>, vector<8x64xi32>
    %24 = vector.extract_strided_slice %6 {offsets = [3, 0], sizes = [1, 64], strides = [1, 1]} : vector<4x64xf32> to vector<1x64xf32>
    %25 = vector.broadcast %24 : vector<1x64xf32> to vector<8x64xf32>
    %26 = arith.mulf %4, %25 : vector<8x64xf32>
    %c0_9 = arith.constant 0 : index
    %c0_10 = arith.constant 0 : index
    %27 = vector.load %arg4[%c0_9, %c0_10] : memref<1x64xf32, #tpu.memory_space<vmem>>, vector<1x64xf32>
    %28 = vector.broadcast %27 : vector<1x64xf32> to vector<8x64xf32>
    %29 = arith.addf %26, %28 : vector<8x64xf32>
    %c1_i32_11 = arith.constant 1 : i32
    %30 = tpu.dynamic_rotate %4 by %c1_i32_11 dim 0 : vector<8x64xf32>, i32 -> vector<8x64xf32>
    %c1_i32_12 = arith.constant 1 : i32
    %31 = vector.broadcast %c1_i32_12 : i32 to vector<8x64xi32>
    %32 = arith.cmpi sge, %23, %31 : vector<8x64xi32>
    %cst_13 = arith.constant 0.000000e+00 : f32
    %33 = vector.broadcast %cst_13 : f32 to vector<8x64xf32>
    %34 = arith.select %32, %30, %33 : vector<8x64xi1>, vector<8x64xf32>
    %35 = vector.extract_strided_slice %6 {offsets = [2, 0], sizes = [1, 64], strides = [1, 1]} : vector<4x64xf32> to vector<1x64xf32>
    %36 = vector.broadcast %35 : vector<1x64xf32> to vector<8x64xf32>
    %37 = arith.mulf %34, %36 : vector<8x64xf32>
    %38 = arith.addf %29, %37 : vector<8x64xf32>
    %c2_i32 = arith.constant 2 : i32
    %39 = tpu.dynamic_rotate %4 by %c2_i32 dim 0 : vector<8x64xf32>, i32 -> vector<8x64xf32>
    %c2_i32_14 = arith.constant 2 : i32
    %40 = vector.broadcast %c2_i32_14 : i32 to vector<8x64xi32>
    %41 = arith.cmpi sge, %23, %40 : vector<8x64xi32>
    %cst_15 = arith.constant 0.000000e+00 : f32
    %42 = vector.broadcast %cst_15 : f32 to vector<8x64xf32>
    %43 = arith.select %41, %39, %42 : vector<8x64xi1>, vector<8x64xf32>
    %44 = vector.extract_strided_slice %6 {offsets = [1, 0], sizes = [1, 64], strides = [1, 1]} : vector<4x64xf32> to vector<1x64xf32>
    %45 = vector.broadcast %44 : vector<1x64xf32> to vector<8x64xf32>
    %46 = arith.mulf %43, %45 : vector<8x64xf32>
    %47 = arith.addf %38, %46 : vector<8x64xf32>
    %c3_i32 = arith.constant 3 : i32
    %48 = tpu.dynamic_rotate %4 by %c3_i32 dim 0 : vector<8x64xf32>, i32 -> vector<8x64xf32>
    %c3_i32_16 = arith.constant 3 : i32
    %49 = vector.broadcast %c3_i32_16 : i32 to vector<8x64xi32>
    %50 = arith.cmpi sge, %23, %49 : vector<8x64xi32>
    %cst_17 = arith.constant 0.000000e+00 : f32
    %51 = vector.broadcast %cst_17 : f32 to vector<8x64xf32>
    %52 = arith.select %50, %48, %51 : vector<8x64xi1>, vector<8x64xf32>
    %53 = vector.extract_strided_slice %6 {offsets = [0, 0], sizes = [1, 64], strides = [1, 1]} : vector<4x64xf32> to vector<1x64xf32>
    %54 = vector.broadcast %53 : vector<1x64xf32> to vector<8x64xf32>
    %55 = arith.mulf %52, %54 : vector<8x64xf32>
    %56 = arith.addf %47, %55 : vector<8x64xf32>
    %57 = arith.negf %56 : vector<8x64xf32>
    %58 = math.exp %57 : vector<8x64xf32>
    %cst_18 = arith.constant 1.000000e+00 : f32
    %59 = vector.broadcast %cst_18 : f32 to vector<8x64xf32>
    %60 = arith.addf %59, %58 : vector<8x64xf32>
    %61 = arith.divf %59, %60 : vector<8x64xf32>
    %62 = arith.mulf %56, %61 : vector<8x64xf32>
    %c0_19 = arith.constant 0 : index
    %c0_20 = arith.constant 0 : index
    %63 = vector.load %arg5[%c0_19, %c0_20] : memref<64x128xbf16, #tpu.memory_space<vmem>>, vector<64x128xbf16>
    %64 = arith.truncf %62 : vector<8x64xf32> to vector<8x64xbf16>
    %cst_21 = arith.constant dense<0.000000e+00> : vector<8x128xf32>
    %65 = tpu.matmul %64, %63, %cst_21 {dimension_numbers = #tpu.dot_dimension_numbers<[1], [0], [0], [1], [0, 0, 1, 1], [], []>} : vector<8x64xbf16>, vector<64x128xbf16>, vector<8x128xf32> -> vector<8x128xf32>
    %66 = vector.extract_strided_slice %65 {offsets = [0, 0], sizes = [8, 2], strides = [1, 1]} : vector<8x128xf32> to vector<8x2xf32>
    %c0_22 = arith.constant 0 : index
    %c0_23 = arith.constant 0 : index
    %67 = vector.load %arg6[%c0_22, %c0_23] : memref<2x64xf32, #tpu.memory_space<vmem>>, vector<2x64xf32>
    %c0_24 = arith.constant 0 : index
    %c0_25 = arith.constant 0 : index
    %68 = vector.load %arg7[%c0_24, %c0_25] : memref<1x64xf32, #tpu.memory_space<vmem>>, vector<1x64xf32>
    %69 = vector.extract_strided_slice %66 {offsets = [0, 0], sizes = [8, 1], strides = [1, 1]} : vector<8x2xf32> to vector<8x1xf32>
    %70 = vector.extract_strided_slice %67 {offsets = [0, 0], sizes = [1, 64], strides = [1, 1]} : vector<2x64xf32> to vector<1x64xf32>
    %71 = vector.broadcast %69 : vector<8x1xf32> to vector<8x64xf32>
    %72 = vector.broadcast %70 : vector<1x64xf32> to vector<8x64xf32>
    %73 = arith.mulf %71, %72 : vector<8x64xf32>
    %74 = vector.extract_strided_slice %66 {offsets = [0, 1], sizes = [8, 1], strides = [1, 1]} : vector<8x2xf32> to vector<8x1xf32>
    %75 = vector.extract_strided_slice %67 {offsets = [1, 0], sizes = [1, 64], strides = [1, 1]} : vector<2x64xf32> to vector<1x64xf32>
    %76 = vector.broadcast %74 : vector<8x1xf32> to vector<8x64xf32>
    %77 = vector.broadcast %75 : vector<1x64xf32> to vector<8x64xf32>
    %78 = arith.mulf %76, %77 : vector<8x64xf32>
    %79 = arith.addf %73, %78 : vector<8x64xf32>
    %80 = vector.broadcast %68 : vector<1x64xf32> to vector<8x64xf32>
    %81 = arith.addf %79, %80 : vector<8x64xf32>
    %cst_26 = arith.constant 0.000000e+00 : f32
    %82 = vector.broadcast %cst_26 : f32 to vector<8x64xf32>
    %83 = arith.maximumf %81, %82 : vector<8x64xf32>
    %84 = math.absf %81 : vector<8x64xf32>
    %cst_27 = arith.constant 0.000000e+00 : f32
    %85 = vector.broadcast %cst_27 : f32 to vector<8x64xf32>
    %86 = arith.subf %85, %84 : vector<8x64xf32>
    %87 = math.exp %86 : vector<8x64xf32>
    %cst_28 = arith.constant 1.000000e+00 : f32
    %88 = vector.broadcast %cst_28 : f32 to vector<8x64xf32>
    %89 = arith.addf %88, %87 : vector<8x64xf32>
    %90 = math.log %89 : vector<8x64xf32>
    %91 = arith.addf %83, %90 : vector<8x64xf32>
    %92 = tpu.transpose %65, [1, 0] : vector<8x128xf32> -> vector<128x8xf32>
    %93 = vector.extract_strided_slice %92 {offsets = [2, 0], sizes = [16, 8], strides = [1, 1]} : vector<128x8xf32> to vector<16x8xf32>
    %94 = vector.extract_strided_slice %92 {offsets = [18, 0], sizes = [16, 8], strides = [1, 1]} : vector<128x8xf32> to vector<16x8xf32>
    %c0_29 = arith.constant 0 : index
    %c0_30 = arith.constant 0 : index
    %95 = vector.load %arg8[%c0_29, %c0_30] : memref<16x64xf32, #tpu.memory_space<vmem>>, vector<16x64xf32>
    %96 = arith.mulf %91, %62 : vector<8x64xf32>
    %cst_31 = arith.constant 0.000000e+00 : f32
    %97 = vector.broadcast %cst_31 : f32 to vector<16x64xf32>
    %98 = vector.shape_cast %91 : vector<8x64xf32> to vector<8x1x64xf32>
    %99 = vector.shape_cast %95 : vector<16x64xf32> to vector<1x16x64xf32>
    %100 = vector.broadcast %98 : vector<8x1x64xf32> to vector<8x16x64xf32>
    %101 = vector.broadcast %99 : vector<1x16x64xf32> to vector<8x16x64xf32>
    %102 = arith.mulf %100, %101 : vector<8x16x64xf32>
    %103 = math.exp %102 : vector<8x16x64xf32>
    %104 = vector.extract_strided_slice %103 {offsets = [0, 0, 0], sizes = [1, 16, 64], strides = [1, 1, 1]} : vector<8x16x64xf32> to vector<1x16x64xf32>
    %105 = vector.shape_cast %104 : vector<1x16x64xf32> to vector<16x64xf32>
    %106 = arith.mulf %105, %97 : vector<16x64xf32>
    %107 = vector.extract_strided_slice %96 {offsets = [0, 0], sizes = [1, 64], strides = [1, 1]} : vector<8x64xf32> to vector<1x64xf32>
    %108 = vector.extract_strided_slice %93 {offsets = [0, 0], sizes = [16, 1], strides = [1, 1]} : vector<16x8xf32> to vector<16x1xf32>
    %109 = vector.broadcast %107 : vector<1x64xf32> to vector<16x64xf32>
    %110 = vector.broadcast %108 : vector<16x1xf32> to vector<16x64xf32>
    %111 = arith.mulf %109, %110 : vector<16x64xf32>
    %112 = arith.addf %106, %111 : vector<16x64xf32>
    %113 = vector.extract_strided_slice %94 {offsets = [0, 0], sizes = [16, 1], strides = [1, 1]} : vector<16x8xf32> to vector<16x1xf32>
    %114 = vector.broadcast %113 : vector<16x1xf32> to vector<16x64xf32>
    %115 = arith.mulf %112, %114 : vector<16x64xf32>
    %cst_32 = arith.constant dense<0.000000e+00> : vector<64xf32>
    %116 = vector.multi_reduction <add>, %115, %cst_32 [0] : vector<16x64xf32> to vector<64xf32>
    %117 = vector.shape_cast %116 : vector<64xf32> to vector<1x64xf32>
    %c0_33 = arith.constant 0 : index
    %c0_34 = arith.constant 0 : index
    %118 = vector.load %arg12[%c0_33, %c0_34] : memref<8x64xf32, #tpu.memory_space<vmem>>, vector<1x64xf32>
    tpu.vector_store %arg12[%c0_33, %c0_34], %117 {strides = array<i32>} : memref<8x64xf32, #tpu.memory_space<vmem>>, vector<1x64xf32>,
    %119 = vector.extract_strided_slice %103 {offsets = [1, 0, 0], sizes = [1, 16, 64], strides = [1, 1, 1]} : vector<8x16x64xf32> to vector<1x16x64xf32>
    %120 = vector.shape_cast %119 : vector<1x16x64xf32> to vector<16x64xf32>
    %121 = arith.mulf %120, %112 : vector<16x64xf32>
    %122 = vector.extract_strided_slice %96 {offsets = [1, 0], sizes = [1, 64], strides = [1, 1]} : vector<8x64xf32> to vector<1x64xf32>
    %123 = vector.extract_strided_slice %93 {offsets = [0, 1], sizes = [16, 1], strides = [1, 1]} : vector<16x8xf32> to vector<16x1xf32>
    %124 = vector.broadcast %122 : vector<1x64xf32> to vector<16x64xf32>
    %125 = vector.broadcast %123 : vector<16x1xf32> to vector<16x64xf32>
    %126 = arith.mulf %124, %125 : vector<16x64xf32>
    %127 = arith.addf %121, %126 : vector<16x64xf32>
    %128 = vector.extract_strided_slice %94 {offsets = [0, 1], sizes = [16, 1], strides = [1, 1]} : vector<16x8xf32> to vector<16x1xf32>
    %129 = vector.broadcast %128 : vector<16x1xf32> to vector<16x64xf32>
    %130 = arith.mulf %127, %129 : vector<16x64xf32>
    %cst_35 = arith.constant dense<0.000000e+00> : vector<64xf32>
    %131 = vector.multi_reduction <add>, %130, %cst_35 [0] : vector<16x64xf32> to vector<64xf32>
    %132 = vector.shape_cast %131 : vector<64xf32> to vector<1x64xf32>
    %c1 = arith.constant 1 : index
    %c0_36 = arith.constant 0 : index
    %133 = vector.load %arg12[%c1, %c0_36] : memref<8x64xf32, #tpu.memory_space<vmem>>, vector<1x64xf32>
    tpu.vector_store %arg12[%c1, %c0_36], %132 {strides = array<i32>} : memref<8x64xf32, #tpu.memory_space<vmem>>, vector<1x64xf32>,
    %134 = vector.extract_strided_slice %103 {offsets = [2, 0, 0], sizes = [1, 16, 64], strides = [1, 1, 1]} : vector<8x16x64xf32> to vector<1x16x64xf32>
    %135 = vector.shape_cast %134 : vector<1x16x64xf32> to vector<16x64xf32>
    %136 = arith.mulf %135, %127 : vector<16x64xf32>
    %137 = vector.extract_strided_slice %96 {offsets = [2, 0], sizes = [1, 64], strides = [1, 1]} : vector<8x64xf32> to vector<1x64xf32>
    %138 = vector.extract_strided_slice %93 {offsets = [0, 2], sizes = [16, 1], strides = [1, 1]} : vector<16x8xf32> to vector<16x1xf32>
    %139 = vector.broadcast %137 : vector<1x64xf32> to vector<16x64xf32>
    %140 = vector.broadcast %138 : vector<16x1xf32> to vector<16x64xf32>
    %141 = arith.mulf %139, %140 : vector<16x64xf32>
    %142 = arith.addf %136, %141 : vector<16x64xf32>
    %143 = vector.extract_strided_slice %94 {offsets = [0, 2], sizes = [16, 1], strides = [1, 1]} : vector<16x8xf32> to vector<16x1xf32>
    %144 = vector.broadcast %143 : vector<16x1xf32> to vector<16x64xf32>
    %145 = arith.mulf %142, %144 : vector<16x64xf32>
    %cst_37 = arith.constant dense<0.000000e+00> : vector<64xf32>
    %146 = vector.multi_reduction <add>, %145, %cst_37 [0] : vector<16x64xf32> to vector<64xf32>
    %147 = vector.shape_cast %146 : vector<64xf32> to vector<1x64xf32>
    %c2 = arith.constant 2 : index
    %c0_38 = arith.constant 0 : index
    %148 = vector.load %arg12[%c2, %c0_38] : memref<8x64xf32, #tpu.memory_space<vmem>>, vector<1x64xf32>
    tpu.vector_store %arg12[%c2, %c0_38], %147 {strides = array<i32>} : memref<8x64xf32, #tpu.memory_space<vmem>>, vector<1x64xf32>,
    %149 = vector.extract_strided_slice %103 {offsets = [3, 0, 0], sizes = [1, 16, 64], strides = [1, 1, 1]} : vector<8x16x64xf32> to vector<1x16x64xf32>
    %150 = vector.shape_cast %149 : vector<1x16x64xf32> to vector<16x64xf32>
    %151 = arith.mulf %150, %142 : vector<16x64xf32>
    %152 = vector.extract_strided_slice %96 {offsets = [3, 0], sizes = [1, 64], strides = [1, 1]} : vector<8x64xf32> to vector<1x64xf32>
    %153 = vector.extract_strided_slice %93 {offsets = [0, 3], sizes = [16, 1], strides = [1, 1]} : vector<16x8xf32> to vector<16x1xf32>
    %154 = vector.broadcast %152 : vector<1x64xf32> to vector<16x64xf32>
    %155 = vector.broadcast %153 : vector<16x1xf32> to vector<16x64xf32>
    %156 = arith.mulf %154, %155 : vector<16x64xf32>
    %157 = arith.addf %151, %156 : vector<16x64xf32>
    %158 = vector.extract_strided_slice %94 {offsets = [0, 3], sizes = [16, 1], strides = [1, 1]} : vector<16x8xf32> to vector<16x1xf32>
    %159 = vector.broadcast %158 : vector<16x1xf32> to vector<16x64xf32>
    %160 = arith.mulf %157, %159 : vector<16x64xf32>
    %cst_39 = arith.constant dense<0.000000e+00> : vector<64xf32>
    %161 = vector.multi_reduction <add>, %160, %cst_39 [0] : vector<16x64xf32> to vector<64xf32>
    %162 = vector.shape_cast %161 : vector<64xf32> to vector<1x64xf32>
    %c3 = arith.constant 3 : index
    %c0_40 = arith.constant 0 : index
    %163 = vector.load %arg12[%c3, %c0_40] : memref<8x64xf32, #tpu.memory_space<vmem>>, vector<1x64xf32>
    tpu.vector_store %arg12[%c3, %c0_40], %162 {strides = array<i32>} : memref<8x64xf32, #tpu.memory_space<vmem>>, vector<1x64xf32>,
    %164 = vector.extract_strided_slice %103 {offsets = [4, 0, 0], sizes = [1, 16, 64], strides = [1, 1, 1]} : vector<8x16x64xf32> to vector<1x16x64xf32>
    %165 = vector.shape_cast %164 : vector<1x16x64xf32> to vector<16x64xf32>
    %166 = arith.mulf %165, %157 : vector<16x64xf32>
    %167 = vector.extract_strided_slice %96 {offsets = [4, 0], sizes = [1, 64], strides = [1, 1]} : vector<8x64xf32> to vector<1x64xf32>
    %168 = vector.extract_strided_slice %93 {offsets = [0, 4], sizes = [16, 1], strides = [1, 1]} : vector<16x8xf32> to vector<16x1xf32>
    %169 = vector.broadcast %167 : vector<1x64xf32> to vector<16x64xf32>
    %170 = vector.broadcast %168 : vector<16x1xf32> to vector<16x64xf32>
    %171 = arith.mulf %169, %170 : vector<16x64xf32>
    %172 = arith.addf %166, %171 : vector<16x64xf32>
    %173 = vector.extract_strided_slice %94 {offsets = [0, 4], sizes = [16, 1], strides = [1, 1]} : vector<16x8xf32> to vector<16x1xf32>
    %174 = vector.broadcast %173 : vector<16x1xf32> to vector<16x64xf32>
    %175 = arith.mulf %172, %174 : vector<16x64xf32>
    %cst_41 = arith.constant dense<0.000000e+00> : vector<64xf32>
    %176 = vector.multi_reduction <add>, %175, %cst_41 [0] : vector<16x64xf32> to vector<64xf32>
    %177 = vector.shape_cast %176 : vector<64xf32> to vector<1x64xf32>
    %c4 = arith.constant 4 : index
    %c0_42 = arith.constant 0 : index
    %178 = vector.load %arg12[%c4, %c0_42] : memref<8x64xf32, #tpu.memory_space<vmem>>, vector<1x64xf32>
    tpu.vector_store %arg12[%c4, %c0_42], %177 {strides = array<i32>} : memref<8x64xf32, #tpu.memory_space<vmem>>, vector<1x64xf32>,
    %179 = vector.extract_strided_slice %103 {offsets = [5, 0, 0], sizes = [1, 16, 64], strides = [1, 1, 1]} : vector<8x16x64xf32> to vector<1x16x64xf32>
    %180 = vector.shape_cast %179 : vector<1x16x64xf32> to vector<16x64xf32>
    %181 = arith.mulf %180, %172 : vector<16x64xf32>
    %182 = vector.extract_strided_slice %96 {offsets = [5, 0], sizes = [1, 64], strides = [1, 1]} : vector<8x64xf32> to vector<1x64xf32>
    %183 = vector.extract_strided_slice %93 {offsets = [0, 5], sizes = [16, 1], strides = [1, 1]} : vector<16x8xf32> to vector<16x1xf32>
    %184 = vector.broadcast %182 : vector<1x64xf32> to vector<16x64xf32>
    %185 = vector.broadcast %183 : vector<16x1xf32> to vector<16x64xf32>
    %186 = arith.mulf %184, %185 : vector<16x64xf32>
    %187 = arith.addf %181, %186 : vector<16x64xf32>
    %188 = vector.extract_strided_slice %94 {offsets = [0, 5], sizes = [16, 1], strides = [1, 1]} : vector<16x8xf32> to vector<16x1xf32>
    %189 = vector.broadcast %188 : vector<16x1xf32> to vector<16x64xf32>
    %190 = arith.mulf %187, %189 : vector<16x64xf32>
    %cst_43 = arith.constant dense<0.000000e+00> : vector<64xf32>
    %191 = vector.multi_reduction <add>, %190, %cst_43 [0] : vector<16x64xf32> to vector<64xf32>
    %192 = vector.shape_cast %191 : vector<64xf32> to vector<1x64xf32>
    %c5 = arith.constant 5 : index
    %c0_44 = arith.constant 0 : index
    %193 = vector.load %arg12[%c5, %c0_44] : memref<8x64xf32, #tpu.memory_space<vmem>>, vector<1x64xf32>
    tpu.vector_store %arg12[%c5, %c0_44], %192 {strides = array<i32>} : memref<8x64xf32, #tpu.memory_space<vmem>>, vector<1x64xf32>,
    %194 = vector.extract_strided_slice %103 {offsets = [6, 0, 0], sizes = [1, 16, 64], strides = [1, 1, 1]} : vector<8x16x64xf32> to vector<1x16x64xf32>
    %195 = vector.shape_cast %194 : vector<1x16x64xf32> to vector<16x64xf32>
    %196 = arith.mulf %195, %187 : vector<16x64xf32>
    %197 = vector.extract_strided_slice %96 {offsets = [6, 0], sizes = [1, 64], strides = [1, 1]} : vector<8x64xf32> to vector<1x64xf32>
    %198 = vector.extract_strided_slice %93 {offsets = [0, 6], sizes = [16, 1], strides = [1, 1]} : vector<16x8xf32> to vector<16x1xf32>
    %199 = vector.broadcast %197 : vector<1x64xf32> to vector<16x64xf32>
    %200 = vector.broadcast %198 : vector<16x1xf32> to vector<16x64xf32>
    %201 = arith.mulf %199, %200 : vector<16x64xf32>
    %202 = arith.addf %196, %201 : vector<16x64xf32>
    %203 = vector.extract_strided_slice %94 {offsets = [0, 6], sizes = [16, 1], strides = [1, 1]} : vector<16x8xf32> to vector<16x1xf32>
    %204 = vector.broadcast %203 : vector<16x1xf32> to vector<16x64xf32>
    %205 = arith.mulf %202, %204 : vector<16x64xf32>
    %cst_45 = arith.constant dense<0.000000e+00> : vector<64xf32>
    %206 = vector.multi_reduction <add>, %205, %cst_45 [0] : vector<16x64xf32> to vector<64xf32>
    %207 = vector.shape_cast %206 : vector<64xf32> to vector<1x64xf32>
    %c6 = arith.constant 6 : index
    %c0_46 = arith.constant 0 : index
    %208 = vector.load %arg12[%c6, %c0_46] : memref<8x64xf32, #tpu.memory_space<vmem>>, vector<1x64xf32>
    tpu.vector_store %arg12[%c6, %c0_46], %207 {strides = array<i32>} : memref<8x64xf32, #tpu.memory_space<vmem>>, vector<1x64xf32>,
    %209 = vector.extract_strided_slice %103 {offsets = [7, 0, 0], sizes = [1, 16, 64], strides = [1, 1, 1]} : vector<8x16x64xf32> to vector<1x16x64xf32>
    %210 = vector.shape_cast %209 : vector<1x16x64xf32> to vector<16x64xf32>
    %211 = arith.mulf %210, %202 : vector<16x64xf32>
    %212 = vector.extract_strided_slice %96 {offsets = [7, 0], sizes = [1, 64], strides = [1, 1]} : vector<8x64xf32> to vector<1x64xf32>
    %213 = vector.extract_strided_slice %93 {offsets = [0, 7], sizes = [16, 1], strides = [1, 1]} : vector<16x8xf32> to vector<16x1xf32>
    %214 = vector.broadcast %212 : vector<1x64xf32> to vector<16x64xf32>
    %215 = vector.broadcast %213 : vector<16x1xf32> to vector<16x64xf32>
    %216 = arith.mulf %214, %215 : vector<16x64xf32>
    %217 = arith.addf %211, %216 : vector<16x64xf32>
    %218 = vector.extract_strided_slice %94 {offsets = [0, 7], sizes = [16, 1], strides = [1, 1]} : vector<16x8xf32> to vector<16x1xf32>
    %219 = vector.broadcast %218 : vector<16x1xf32> to vector<16x64xf32>
    %220 = arith.mulf %217, %219 : vector<16x64xf32>
    %cst_47 = arith.constant dense<0.000000e+00> : vector<64xf32>
    %221 = vector.multi_reduction <add>, %220, %cst_47 [0] : vector<16x64xf32> to vector<64xf32>
    %222 = vector.shape_cast %221 : vector<64xf32> to vector<1x64xf32>
    %c7 = arith.constant 7 : index
    %c0_48 = arith.constant 0 : index
    %223 = vector.load %arg12[%c7, %c0_48] : memref<8x64xf32, #tpu.memory_space<vmem>>, vector<1x64xf32>
    tpu.vector_store %arg12[%c7, %c0_48], %222 {strides = array<i32>} : memref<8x64xf32, #tpu.memory_space<vmem>>, vector<1x64xf32>,
    %c0_49 = arith.constant 0 : index
    %c0_50 = arith.constant 0 : index
    %224 = vector.load %arg12[%c0_49, %c0_50] : memref<8x64xf32, #tpu.memory_space<vmem>>, vector<8x64xf32>
    %c0_51 = arith.constant 0 : index
    %c0_52 = arith.constant 0 : index
    %225 = vector.load %arg9[%c0_51, %c0_52] : memref<1x64xf32, #tpu.memory_space<vmem>>, vector<1x64xf32>
    %226 = vector.broadcast %225 : vector<1x64xf32> to vector<8x64xf32>
    %227 = arith.mulf %62, %226 : vector<8x64xf32>
    %228 = arith.addf %224, %227 : vector<8x64xf32>
    %229 = arith.negf %5 : vector<8x64xf32>
    %230 = math.exp %229 : vector<8x64xf32>
    %cst_53 = arith.constant 1.000000e+00 : f32
    %231 = vector.broadcast %cst_53 : f32 to vector<8x64xf32>
    %232 = arith.addf %231, %230 : vector<8x64xf32>
    %233 = arith.divf %231, %232 : vector<8x64xf32>
    %234 = arith.mulf %5, %233 : vector<8x64xf32>
    %235 = arith.mulf %228, %234 : vector<8x64xf32>
    %c0_54 = arith.constant 0 : index
    %c0_55 = arith.constant 0 : index
    %236 = vector.load %arg10[%c0_54, %c0_55] : memref<64x32xbf16, #tpu.memory_space<vmem>>, vector<64x32xbf16>
    %237 = arith.truncf %235 : vector<8x64xf32> to vector<8x64xbf16>
    %cst_56 = arith.constant dense<0.000000e+00> : vector<8x32xf32>
    %238 = tpu.matmul %237, %236, %cst_56 {dimension_numbers = #tpu.dot_dimension_numbers<[1], [0], [0], [1], [0, 0, 1, 1], [], []>} : vector<8x64xbf16>, vector<64x32xbf16>, vector<8x32xf32> -> vector<8x32xf32>
    %239 = vector.shape_cast %238 : vector<8x32xf32> to vector<1x8x32xf32>
    %c0_57 = arith.constant 0 : index
    %c0_58 = arith.constant 0 : index
    %c0_59 = arith.constant 0 : index
    %240 = vector.load %arg11[%c0_57, %c0_58, %c0_59] : memref<1x8x32xf32, #tpu.memory_space<vmem>>, vector<1x8x32xf32>
    tpu.vector_store %arg11[%c0_57, %c0_58, %c0_59], %239 {strides = array<i32>} : memref<1x8x32xf32, #tpu.memory_space<vmem>>, vector<1x8x32xf32>,
    return
  }
  func.func @transform_0(%arg0: i32) -> (i32, i32, i32) {
    %c0_i32 = arith.constant 0 : i32
    %c0_i32_0 = arith.constant 0 : i32
    %c0_i32_1 = arith.constant 0 : i32
    return %arg0, %c0_i32, %c0_i32_0 : i32, i32, i32
  }
  func.func @transform_1(%arg0: i32) -> (i32, i32) {
    %c0_i32 = arith.constant 0 : i32
    %c0_i32_0 = arith.constant 0 : i32
    %c0_i32_1 = arith.constant 0 : i32
    return %c0_i32, %c0_i32_0 : i32, i32
  }
  func.func @transform_2(%arg0: i32) -> (i32, i32) {
    %c0_i32 = arith.constant 0 : i32
    %c0_i32_0 = arith.constant 0 : i32
    %c0_i32_1 = arith.constant 0 : i32
    return %c0_i32, %c0_i32_0 : i32, i32
  }
  func.func @transform_3(%arg0: i32) -> (i32, i32) {
    %c0_i32 = arith.constant 0 : i32
    %c0_i32_0 = arith.constant 0 : i32
    %c0_i32_1 = arith.constant 0 : i32
    return %c0_i32, %c0_i32_0 : i32, i32
  }
  func.func @transform_4(%arg0: i32) -> (i32, i32) {
    %c0_i32 = arith.constant 0 : i32
    %c0_i32_0 = arith.constant 0 : i32
    %c0_i32_1 = arith.constant 0 : i32
    return %c0_i32, %c0_i32_0 : i32, i32
  }
  func.func @transform_5(%arg0: i32) -> (i32, i32) {
    %c0_i32 = arith.constant 0 : i32
    %c0_i32_0 = arith.constant 0 : i32
    %c0_i32_1 = arith.constant 0 : i32
    return %c0_i32, %c0_i32_0 : i32, i32
  }
  func.func @transform_6(%arg0: i32) -> (i32, i32) {
    %c0_i32 = arith.constant 0 : i32
    %c0_i32_0 = arith.constant 0 : i32
    %c0_i32_1 = arith.constant 0 : i32
    return %c0_i32, %c0_i32_0 : i32, i32
  }
  func.func @transform_7(%arg0: i32) -> (i32, i32) {
    %c0_i32 = arith.constant 0 : i32
    %c0_i32_0 = arith.constant 0 : i32
    %c0_i32_1 = arith.constant 0 : i32
    return %c0_i32, %c0_i32_0 : i32, i32
  }
  func.func @transform_8(%arg0: i32) -> (i32, i32) {
    %c0_i32 = arith.constant 0 : i32
    %c0_i32_0 = arith.constant 0 : i32
    %c0_i32_1 = arith.constant 0 : i32
    return %c0_i32, %c0_i32_0 : i32, i32
  }
  func.func @transform_9(%arg0: i32) -> (i32, i32) {
    %c0_i32 = arith.constant 0 : i32
    %c0_i32_0 = arith.constant 0 : i32
    %c0_i32_1 = arith.constant 0 : i32
    return %c0_i32, %c0_i32_0 : i32, i32
  }
  func.func @transform_10(%arg0: i32) -> (i32, i32, i32) {
    %c0_i32 = arith.constant 0 : i32
    %c0_i32_0 = arith.constant 0 : i32
    %c0_i32_1 = arith.constant 0 : i32
    return %arg0, %c0_i32, %c0_i32_0 : i32, i32, i32
  }
}

</mosaic_0001>

<llo_original>
// kernel: tpu_custom_call.1
$region0: #{tpu_custom_call.1}
  #allocation0 [shape = 'u32[]', space=smem, size = 0x4, offset = 0x4, fixed_abs, tag = 'smem constant byte address 0x4 - core index']
  #allocation1 [shape = 'u32[144,128]{1,0:T(1,128)}', space=vmem, size = 0x12000, scoped, tag = 'internal scratch']
  #allocation2 [shape = 'f32[8,64]{1,0:T(8,128)}', space=vmem, size = 0x1000, scoped, tag = 'scratch operand']
  %s0 = inlined_call_operand.vmem [shape: bf16[2,8,32], index: 0, kind: input, shape index: {}]
  %s1 = inlined_call_operand.vmem [shape: bf16[32,128], index: 1, kind: input, shape index: {}]
  %s2 = inlined_call_operand.vmem [shape: f32[4,64], index: 2, kind: input, shape index: {}]
  %s3 = inlined_call_operand.hbm [shape: f32[1,64], index: 3, kind: input, shape index: {}]
  %s4 = inlined_call_operand.vmem [shape: bf16[64,128], index: 4, kind: input, shape index: {}]
  %s5 = inlined_call_operand.vmem [shape: f32[2,64], index: 5, kind: input, shape index: {}]
  %s6 = inlined_call_operand.hbm [shape: f32[1,64], index: 6, kind: input, shape index: {}]
  %s7 = inlined_call_operand.hbm [shape: f32[16,64], index: 7, kind: input, shape index: {}]
  %s8 = inlined_call_operand.hbm [shape: f32[1,64], index: 8, kind: input, shape index: {}]
  %s9 = inlined_call_operand.vmem [shape: bf16[64,32], index: 9, kind: input, shape index: {}]
  %s10 = inlined_call_operand.hbm [shape: f32[2,8,32], index: 10, kind: output, shape index: {}]
  %s11 = sld [smem:[#allocation0]]
  $region89: #{tpu_custom_call.1} parent=0
    _
  %s13 = ssub.s32 1, %s11
  %s14 = scalar_select 0, %s13, %s11
  $region1: #{tpu_custom_call.1} parent=0
    #allocation3 [shape = 'u8[512]{0}', space=vmem, size = 0x400, scoped, tag = 'input window, operand 3, single buffered']
    #allocation4 [shape = 's32[2]{0}', space=sflag, size = 0x8, scoped, tag = 'scoped memory for tpu_custom_call.1']
    #allocation5 [shape = 's32[2]{0}', space=sflag, size = 0x8, scoped, tag = 'scoped memory for tpu_custom_call.1']
    #allocation6 [shape = 'u8[512]{0}', space=vmem, size = 0x400, scoped, tag = 'input window, operand 6, single buffered']
    #allocation7 [shape = 's32[1]{0}', space=sflag, size = 0x4, scoped, tag = 'scoped memory for tpu_custom_call.1']
    #allocation8 [shape = 'u8[8192]{0}', space=vmem, size = 0x2000, scoped, tag = 'input window, operand 7, single buffered']
    #allocation9 [shape = 'u8[512]{0}', space=vmem, size = 0x400, scoped, tag = 'input window, operand 8, single buffered']
    #allocation10 [shape = 's32[1]{0}', space=sflag, size = 0x4, scoped, tag = 'scoped memory for tpu_custom_call.1']
    #allocation11 [shape = 'u8[8192]{0}', space=vmem, size = 0x2000, scoped, tag = 'output window, operand 0']
    %15 = vsyncpa [#allocation4], 0
    %16 = vsyncpa [#allocation7], 0
    %17 = vsyncpa [#allocation10], 0
    %18 = vsyncpa [#allocation5], 0
    %s19 = scalar_lea.sflag [#allocation5], 1
    %20 = vsyncpa %s19, 0
    loop: start=0, step=1, limit=4
    $region2: #{tpu_custom_call.1} parent=1 // loop_pre_header
      _
    $region3: #{tpu_custom_call.1} parent=1 // loop_header
      %s22 = sphi 0, %s26
      %p23 = scmp.ge.s32.totalorder %s22, 4
      %s32 = sphi 0, %s34
      %s35 = sphi 0, %s32
      %s36 = sphi 0, %s35
      %s52 = sphi 0, %s36
      %s56 = sphi 0, %s56
      %s58 = sphi 0, %s56
      %s59 = sphi 0, %s58
      %s73 = sphi 0, %s59
      %s77 = sphi 0, %s77
      %s79 = sphi 0, %s77
      %s80 = sphi 0, %s79
      %s94 = sphi 0, %s80
      %s98 = sphi 0, %s98
      %s100 = sphi 0, %s98
      %s101 = sphi 0, %s100
      %s115 = sphi 0, %s101
      %s119 = sphi 0, %s119
      %s121 = sphi 0, %s119
      %s122 = sphi 0, %s121
      %s136 = sphi 0, %s122
      %s140 = sphi 0, %s140
      %s142 = sphi 0, %s140
      %s143 = sphi 0, %s142
      %s157 = sphi 0, %s143
      %s161 = sphi 0, %s161
      %s163 = sphi 0, %s161
      %s164 = sphi 0, %s163
      %s178 = sphi 0, %s164
      %s182 = sphi 0, %s182
      %s184 = sphi 0, %s182
      %s185 = sphi 0, %s184
      %s199 = sphi 0, %s185
      %s203 = sphi 0, %s203
      %s205 = sphi 0, %s203
      %s206 = sphi 0, %s205
      %s220 = sphi 0, %s206
      %s224 = sphi 0, %s224
      %s226 = sphi 0, %s224
      %s227 = sphi 0, %s226
      %s241 = sphi 0, %s227
      %s247 = sphi 0, %s249
      %s250 = sphi 0, %s247
      %s251 = sphi 0, %s250
      %s267 = sphi 0, %s251
    $region4: #{tpu_custom_call.1} parent=1 // loop_header_branch
      %25 = sbr.rel (%p23) target = $region8
    $region5: #{tpu_custom_call.1} parent=1 // loop_body
      %s27 = ssub.s32 %s22, 1
      %s28 = ssub.s32 %s22, 2
      %s29 = sadd.s32 %s22, 1
      %s30 = ssub.s32 %s22, %s29
      %p31 = scmp.eq.s32.totalorder %s30, 0
      %s33 = sadd.s32 %s32, 1
      %s34 = scalar_select %p31, %s32, %s33
      %p37 = pneg %p31
      %p38 = scmp.eq.s32.totalorder %s22, 1
      %p39 = por %p37, %p38
      %p40 = scmp.ne.s32.totalorder %s32, %s35
      %p41 = scmp.eq.s32.totalorder %s22, 0
      %p42 = por %p40, %p41
      %p43 = scmp.ne.s32.totalorder %s32, %s35
      %p44 = scmp.eq.s32.totalorder %s27, 1
      %p45 = por %p43, %p44
      %p46 = scmp.ne.s32.totalorder %s35, %s36
      %p47 = scmp.eq.s32.totalorder %s27, 0
      %p48 = por %p46, %p47
      %p49 = scmp.ne.s32.totalorder %s35, %s36
      %p50 = scmp.eq.s32.totalorder %s28, 1
      %p51 = por %p49, %p50
      %p53 = scmp.ne.s32.totalorder %s36, %s52
      %p54 = scmp.eq.s32.totalorder %s28, 0
      %p55 = por %p53, %p54
      %s57 = sadd.s32 %s56, 1
      %p60 = scmp.eq.s32.totalorder %s22, 1
      %p61 = scmp.ne.s32.totalorder %s56, %s58
      %p62 = scmp.eq.s32.totalorder %s22, 0
      %p63 = por %p61, %p62
      %p64 = scmp.ne.s32.totalorder %s56, %s58
      %p65 = scmp.eq.s32.totalorder %s27, 1
      %p66 = por %p64, %p65
      %p67 = scmp.ne.s32.totalorder %s58, %s59
      %p68 = scmp.eq.s32.totalorder %s27, 0
      %p69 = por %p67, %p68
      %p70 = scmp.ne.s32.totalorder %s58, %s59
      %p71 = scmp.eq.s32.totalorder %s28, 1
      %p72 = por %p70, %p71
      %p74 = scmp.ne.s32.totalorder %s59, %s73
      %p75 = scmp.eq.s32.totalorder %s28, 0
      %p76 = por %p74, %p75
      %s78 = sadd.s32 %s77, 1
      %p81 = scmp.eq.s32.totalorder %s22, 1
      %p82 = scmp.ne.s32.totalorder %s77, %s79
      %p83 = scmp.eq.s32.totalorder %s22, 0
      %p84 = por %p82, %p83
      %p85 = scmp.ne.s32.totalorder %s77, %s79
      %p86 = scmp.eq.s32.totalorder %s27, 1
      %p87 = por %p85, %p86
      %p88 = scmp.ne.s32.totalorder %s79, %s80
      %p89 = scmp.eq.s32.totalorder %s27, 0
      %p90 = por %p88, %p89
      %p91 = scmp.ne.s32.totalorder %s79, %s80
      %p92 = scmp.eq.s32.totalorder %s28, 1
      %p93 = por %p91, %p92
      %p95 = scmp.ne.s32.totalorder %s80, %s94
      %p96 = scmp.eq.s32.totalorder %s28, 0
      %p97 = por %p95, %p96
      %s99 = sadd.s32 %s98, 1
      %p102 = scmp.eq.s32.totalorder %s22, 1
      %p103 = scmp.ne.s32.totalorder %s98, %s100
      %p104 = scmp.eq.s32.totalorder %s22, 0
      %p105 = por %p103, %p104
      %p106 = scmp.ne.s32.totalorder %s98, %s100
      %p107 = scmp.eq.s32.totalorder %s27, 1
      %p108 = por %p106, %p107
      %p109 = scmp.ne.s32.totalorder %s100, %s101
      %p110 = scmp.eq.s32.totalorder %s27, 0
      %p111 = por %p109, %p110
      %p112 = scmp.ne.s32.totalorder %s100, %s101
      %p113 = scmp.eq.s32.totalorder %s28, 1
      %p114 = por %p112, %p113
      %p116 = scmp.ne.s32.totalorder %s101, %s115
      %p117 = scmp.eq.s32.totalorder %s28, 0
      %p118 = por %p116, %p117
      %s120 = sadd.s32 %s119, 1
      %p123 = scmp.eq.s32.totalorder %s22, 1
      %p124 = scmp.ne.s32.totalorder %s119, %s121
      %p125 = scmp.eq.s32.totalorder %s22, 0
      %p126 = por %p124, %p125
      %p127 = scmp.ne.s32.totalorder %s119, %s121
      %p128 = scmp.eq.s32.totalorder %s27, 1
      %p129 = por %p127, %p128
      %p130 = scmp.ne.s32.totalorder %s121, %s122
      %p131 = scmp.eq.s32.totalorder %s27, 0
      %p132 = por %p130, %p131
      %p133 = scmp.ne.s32.totalorder %s121, %s122
      %p134 = scmp.eq.s32.totalorder %s28, 1
      %p135 = por %p133, %p134
      %p137 = scmp.ne.s32.totalorder %s122, %s136
      %p138 = scmp.eq.s32.totalorder %s28, 0
      %p139 = por %p137, %p138
      %s141 = sadd.s32 %s140, 1
      %p144 = scmp.eq.s32.totalorder %s22, 1
      %p145 = scmp.ne.s32.totalorder %s140, %s142
      %p146 = scmp.eq.s32.totalorder %s22, 0
      %p147 = por %p145, %p146
      %p148 = scmp.ne.s32.totalorder %s140, %s142
      %p149 = scmp.eq.s32.totalorder %s27, 1
      %p150 = por %p148, %p149
      %p151 = scmp.ne.s32.totalorder %s142, %s143
      %p152 = scmp.eq.s32.totalorder %s27, 0
      %p153 = por %p151, %p152
      %p154 = scmp.ne.s32.totalorder %s142, %s143
      %p155 = scmp.eq.s32.totalorder %s28, 1
      %p156 = por %p154, %p155
      %p158 = scmp.ne.s32.totalorder %s143, %s157
      %p159 = scmp.eq.s32.totalorder %s28, 0
      %p160 = por %p158, %p159
      %s162 = sadd.s32 %s161, 1
      %p165 = scmp.eq.s32.totalorder %s22, 1
      %p166 = scmp.ne.s32.totalorder %s161, %s163
      %p167 = scmp.eq.s32.totalorder %s22, 0
      %p168 = por %p166, %p167
      %p169 = scmp.ne.s32.totalorder %s161, %s163
      %p170 = scmp.eq.s32.totalorder %s27, 1
      %p171 = por %p169, %p170
      %p172 = scmp.ne.s32.totalorder %s163, %s164
      %p173 = scmp.eq.s32.totalorder %s27, 0
      %p174 = por %p172, %p173
      %p175 = scmp.ne.s32.totalorder %s163, %s164
      %p176 = scmp.eq.s32.totalorder %s28, 1
      %p177 = por %p175, %p176
      %p179 = scmp.ne.s32.totalorder %s164, %s178
      %p180 = scmp.eq.s32.totalorder %s28, 0
      %p181 = por %p179, %p180
      %s183 = sadd.s32 %s182, 1
      %p186 = scmp.eq.s32.totalorder %s22, 1
      %p187 = scmp.ne.s32.totalorder %s182, %s184
      %p188 = scmp.eq.s32.totalorder %s22, 0
      %p189 = por %p187, %p188
      %p190 = scmp.ne.s32.totalorder %s182, %s184
      %p191 = scmp.eq.s32.totalorder %s27, 1
      %p192 = por %p190, %p191
      %p193 = scmp.ne.s32.totalorder %s184, %s185
      %p194 = scmp.eq.s32.totalorder %s27, 0
      %p195 = por %p193, %p194
      %p196 = scmp.ne.s32.totalorder %s184, %s185
      %p197 = scmp.eq.s32.totalorder %s28, 1
      %p198 = por %p196, %p197
      %p200 = scmp.ne.s32.totalorder %s185, %s199
      %p201 = scmp.eq.s32.totalorder %s28, 0
      %p202 = por %p200, %p201
      %s204 = sadd.s32 %s203, 1
      %p207 = scmp.eq.s32.totalorder %s22, 1
      %p208 = scmp.ne.s32.totalorder %s203, %s205
      %p209 = scmp.eq.s32.totalorder %s22, 0
      %p210 = por %p208, %p209
      %p211 = scmp.ne.s32.totalorder %s203, %s205
      %p212 = scmp.eq.s32.totalorder %s27, 1
      %p213 = por %p211, %p212
      %p214 = scmp.ne.s32.totalorder %s205, %s206
      %p215 = scmp.eq.s32.totalorder %s27, 0
      %p216 = por %p214, %p215
      %p217 = scmp.ne.s32.totalorder %s205, %s206
      %p218 = scmp.eq.s32.totalorder %s28, 1
      %p219 = por %p217, %p218
      %p221 = scmp.ne.s32.totalorder %s206, %s220
      %p222 = scmp.eq.s32.totalorder %s28, 0
      %p223 = por %p221, %p222
      %s225 = sadd.s32 %s224, 1
      %p228 = scmp.eq.s32.totalorder %s22, 1
      %p229 = scmp.ne.s32.totalorder %s224, %s226
      %p230 = scmp.eq.s32.totalorder %s22, 0
      %p231 = por %p229, %p230
      %p232 = scmp.ne.s32.totalorder %s224, %s226
      %p233 = scmp.eq.s32.totalorder %s27, 1
      %p234 = por %p232, %p233
      %p235 = scmp.ne.s32.totalorder %s226, %s227
      %p236 = scmp.eq.s32.totalorder %s27, 0
      %p237 = por %p235, %p236
      %p238 = scmp.ne.s32.totalorder %s226, %s227
      %p239 = scmp.eq.s32.totalorder %s28, 1
      %p240 = por %p238, %p239
      %p242 = scmp.ne.s32.totalorder %s227, %s241
      %p243 = scmp.eq.s32.totalorder %s28, 0
      %p244 = por %p242, %p243
      %s245 = ssub.s32 %s22, %s29
      %p246 = scmp.eq.s32.totalorder %s245, 0
      %s248 = sadd.s32 %s247, 1
      %s249 = scalar_select %p246, %s247, %s248
      %p252 = pneg %p246
      %p253 = scmp.eq.s32.totalorder %s22, 1
      %p254 = por %p252, %p253
      %p255 = scmp.ne.s32.totalorder %s247, %s250
      %p256 = scmp.eq.s32.totalorder %s22, 0
      %p257 = por %p255, %p256
      %p258 = scmp.ne.s32.totalorder %s247, %s250
      %p259 = scmp.eq.s32.totalorder %s27, 1
      %p260 = por %p258, %p259
      %p261 = scmp.ne.s32.totalorder %s250, %s251
      %p262 = scmp.eq.s32.totalorder %s27, 0
      %p263 = por %p261, %p262
      %p264 = scmp.ne.s32.totalorder %s250, %s251
      %p265 = scmp.eq.s32.totalorder %s28, 1
      %p266 = por %p264, %p265
      %p268 = scmp.ne.s32.totalorder %s251, %s267
      %p269 = scmp.eq.s32.totalorder %s28, 0
      %p270 = por %p268, %p269
      %p271 = scmp.le.s32.totalorder 1, %s22
      %p272 = scmp.lt.s32.totalorder %s22, 3
      %p273 = pnand %p271, %p272
      %p274 = pneg %p273
      // Predicated region
      $region9: #{tpu_custom_call.1} parent=5 // pred_check
        _
      $region10: #{tpu_custom_call.1} parent=5 // pred_check_branch
        %276 = sbr.rel (%p273) target = $region12
      $region11: #{tpu_custom_call.1} parent=5 // pred_region
        %s277 = ssub.s32 %s22, 1
        // Predicated region
        $region13: #{tpu_custom_call.1} parent=11 // pred_check
          %p278 = pneg %p69
        $region14: #{tpu_custom_call.1} parent=11 // pred_check_branch
          %280 = sbr.rel (%p278) target = $region16
        $region15: #{tpu_custom_call.1} parent=11 // pred_region
          _
        $region16: #{tpu_custom_call.1} parent=11 // pred_fallthru
          _
        // Predicated region
        $region17: #{tpu_custom_call.1} parent=11 // pred_check
          %p281 = pneg %p90
        $region18: #{tpu_custom_call.1} parent=11 // pred_check_branch
          %283 = sbr.rel (%p281) target = $region20
        $region19: #{tpu_custom_call.1} parent=11 // pred_region
          _
        $region20: #{tpu_custom_call.1} parent=11 // pred_fallthru
          _
        // Predicated region
        $region21: #{tpu_custom_call.1} parent=11 // pred_check
          %p284 = pneg %p111
        $region22: #{tpu_custom_call.1} parent=11 // pred_check_branch
          %286 = sbr.rel (%p284) target = $region24
        $region23: #{tpu_custom_call.1} parent=11 // pred_region
          %s288 = ssub.s32 16, 16
          %289 = vsyncadd [#allocation4], %s288
          %s291 = sshll.u32 [#allocation3], 4
          %s292 = int_to_ptr.vmem [resolvable:$true] %s291
          %294 = dma.hbm_to_vmem [thread:$0]  %s3, 16, %s292, [#allocation4]
        $region24: #{tpu_custom_call.1} parent=11 // pred_fallthru
          _
        // Predicated region
        $region25: #{tpu_custom_call.1} parent=11 // pred_check
          %p295 = pneg %p132
        $region26: #{tpu_custom_call.1} parent=11 // pred_check_branch
          %297 = sbr.rel (%p295) target = $region28
        $region27: #{tpu_custom_call.1} parent=11 // pred_region
          _
        $region28: #{tpu_custom_call.1} parent=11 // pred_fallthru
          _
        // Predicated region
        $region29: #{tpu_custom_call.1} parent=11 // pred_check
          %p298 = pneg %p153
        $region30: #{tpu_custom_call.1} parent=11 // pred_check_branch
          %300 = sbr.rel (%p298) target = $region32
        $region31: #{tpu_custom_call.1} parent=11 // pred_region
          _
        $region32: #{tpu_custom_call.1} parent=11 // pred_fallthru
          _
        // Predicated region
        $region33: #{tpu_custom_call.1} parent=11 // pred_check
          %p301 = pneg %p174
        $region34: #{tpu_custom_call.1} parent=11 // pred_check_branch
          %303 = sbr.rel (%p301) target = $region36
        $region35: #{tpu_custom_call.1} parent=11 // pred_region
          %s305 = ssub.s32 16, 16
          %306 = vsyncadd [#allocation7], %s305
          %s308 = sshll.u32 [#allocation6], 4
          %s309 = int_to_ptr.vmem [resolvable:$true] %s308
          %311 = dma.hbm_to_vmem [thread:$0]  %s6, 16, %s309, [#allocation7]
        $region36: #{tpu_custom_call.1} parent=11 // pred_fallthru
          _
        // Predicated region
        $region37: #{tpu_custom_call.1} parent=11 // pred_check
          %p312 = pneg %p195
        $region38: #{tpu_custom_call.1} parent=11 // pred_check_branch
          %314 = sbr.rel (%p312) target = $region40
        $region39: #{tpu_custom_call.1} parent=11 // pred_region
          %s316 = ssub.s32 256, 256
          %317 = vsyncadd [#allocation7], %s316
          %s318 = sshll.u32 [#allocation8], 4
          %s319 = int_to_ptr.vmem [resolvable:$true] %s318
          %324 = dma.hbm_to_vmem [thread:$0]  %s7, 256, %s319, [#allocation7], 128, 128, 8
        $region40: #{tpu_custom_call.1} parent=11 // pred_fallthru
          _
        // Predicated region
        $region41: #{tpu_custom_call.1} parent=11 // pred_check
          %p325 = pneg %p216
        $region42: #{tpu_custom_call.1} parent=11 // pred_check_branch
          %327 = sbr.rel (%p325) target = $region44
        $region43: #{tpu_custom_call.1} parent=11 // pred_region
          %s329 = ssub.s32 16, 16
          %330 = vsyncadd [#allocation10], %s329
          %s332 = sshll.u32 [#allocation9], 4
          %s333 = int_to_ptr.vmem [resolvable:$true] %s332
          %335 = dma.hbm_to_vmem [thread:$0]  %s8, 16, %s333, [#allocation10]
        $region44: #{tpu_custom_call.1} parent=11 // pred_fallthru
          _
        // Predicated region
        $region45: #{tpu_custom_call.1} parent=11 // pred_check
          %p336 = pneg %p237
        $region46: #{tpu_custom_call.1} parent=11 // pred_check_branch
          %338 = sbr.rel (%p336) target = $region48
        $region47: #{tpu_custom_call.1} parent=11 // pred_region
          _
        $region48: #{tpu_custom_call.1} parent=11 // pred_fallthru
          _
      $region12: #{tpu_custom_call.1} parent=5 // pred_fallthru
        _
      %p339 = scmp.lt.s32.totalorder %s22, 2
      // Predicated region
      $region49: #{tpu_custom_call.1} parent=5 // pred_check
        %p340 = pneg %p339
      $region50: #{tpu_custom_call.1} parent=5 // pred_check_branch
        %342 = sbr.rel (%p340) target = $region52
      $region51: #{tpu_custom_call.1} parent=5 // pred_region
        // Predicated region
        $region53: #{tpu_custom_call.1} parent=51 // pred_check
          %p343 = pneg %p42
        $region54: #{tpu_custom_call.1} parent=51 // pred_check_branch
          %345 = sbr.rel (%p343) target = $region56
        $region55: #{tpu_custom_call.1} parent=51 // pred_region
          %p346 = scmp.lt.s32.totalorder %s22, 1
          %s347 = scalar_select %p346, %s22, 1
          %s348 = smul.addr %s347, 4
          %s349 = scalar_lea.vmem %s0, %s348
        $region56: #{tpu_custom_call.1} parent=51 // pred_fallthru
          _
      $region52: #{tpu_custom_call.1} parent=5 // pred_fallthru
        _
      %p350 = scmp.le.s32.totalorder 1, %s22
      %p351 = scmp.lt.s32.totalorder %s22, 3
      %p352 = pnand %p350, %p351
      %p353 = pneg %p352
      // Predicated region
      $region57: #{tpu_custom_call.1} parent=5 // pred_check
        _
      $region58: #{tpu_custom_call.1} parent=5 // pred_check_branch
        %355 = sbr.rel (%p352) target = $region60
      $region59: #{tpu_custom_call.1} parent=5 // pred_region
        %s356 = ssub.s32 %s22, 1
        // Predicated region
        $region61: #{tpu_custom_call.1} parent=59 // pred_check
          %p357 = pneg %p111
        $region62: #{tpu_custom_call.1} parent=59 // pred_check_branch
          %359 = sbr.rel (%p357) target = $region64
        $region63: #{tpu_custom_call.1} parent=59 // pred_region
          %360 = dma.done [#allocation4], 16
        $region64: #{tpu_custom_call.1} parent=59 // pred_fallthru
          _
        // Predicated region
        $region65: #{tpu_custom_call.1} parent=59 // pred_check
          %p361 = pneg %p174
        $region66: #{tpu_custom_call.1} parent=59 // pred_check_branch
          %363 = sbr.rel (%p361) target = $region68
        $region67: #{tpu_custom_call.1} parent=59 // pred_region
          %364 = dma.done [#allocation7], 16
        $region68: #{tpu_custom_call.1} parent=59 // pred_fallthru
          _
        // Predicated region
        $region69: #{tpu_custom_call.1} parent=59 // pred_check
          %p365 = pneg %p195
        $region70: #{tpu_custom_call.1} parent=59 // pred_check_branch
          %367 = sbr.rel (%p365) target = $region72
        $region71: #{tpu_custom_call.1} parent=59 // pred_region
          %368 = dma.done [#allocation7], 256
        $region72: #{tpu_custom_call.1} parent=59 // pred_fallthru
          _
        // Predicated region
        $region73: #{tpu_custom_call.1} parent=59 // pred_check
          %p369 = pneg %p216
        $region74: #{tpu_custom_call.1} parent=59 // pred_check_branch
          %371 = sbr.rel (%p369) target = $region76
        $region75: #{tpu_custom_call.1} parent=59 // pred_region
          %372 = dma.done [#allocation10], 16
        $region76: #{tpu_custom_call.1} parent=59 // pred_fallthru
          _
        %p373 = scmp.lt.s32.totalorder %s27, 1
        %s374 = scalar_select %p373, %s27, 1
        %s375 = smul.addr %s374, 4
        %s376 = scalar_lea.vmem %s0, %s375
        %p377 = pneg %p48
        %p378 = pneg %p45
        %p379 = pneg %p69
        %p380 = pneg %p66
        %p381 = pneg %p90
        %p382 = pneg %p87
        %p383 = pneg %p111
        %p384 = pneg %p108
        %p385 = pneg %p132
        %p386 = pneg %p129
        %p387 = pneg %p153
        %p388 = pneg %p150
        %p389 = pneg %p174
        %p390 = pneg %p171
        %p391 = pneg %p195
        %p392 = pneg %p192
        %p393 = pneg %p216
        %p394 = pneg %p213
        %p395 = pneg %p237
        %p396 = pneg %p234
        %p397 = pneg %p263
        %p398 = pneg %p260
        %s399 = sand.u32 %s250, 1
        %s400 = scalar_lea.sflag [#allocation5], %s399
        %s401 = sand.u32 %s250, 1
        %s402 = smul.addr %s401, 8
        %s403 = scalar_lea.vmem [#allocation11], %s402
        %p404 = scmp.lt.s32.totalorder %s27, 1
        %s405 = scalar_select %p404, %s27, 1
        %s406 = smul.addr %s405, 4
        %s407 = scalar_lea.vmem %s0, %s406
        %v409 = vld [vmem:[%s407] sm:$0xf]
        %v410 = vld [vmem:[%s1] sm:$0xf]
        %v411 = vld [vmem:[%s1 + $0x4] sm:$0xf]
        %v412 = vld [vmem:[%s1 + $0x8] sm:$0xf]
        %v413 = vld [vmem:[%s1 + $0xc] sm:$0xf]
        %v418 = vunpack.c.l.b16 %v410
        %v419 = vunpack.c.l.b16 %v411
        %v420 = vunpack.c.l.b16 %v412
        %v421 = vunpack.c.l.b16 %v413
        %v422 = vpack.c.b16 %v419, %v418
        %v423 = vpack.c.b16 %v421, %v420
        %vm426 = vcmask 261120
        %v428 = vsel %vm426, %v409, 0
        %430 = vmatprep.subr.bf16.mxu0 0
        %431 = vmatpush1.bf16.msra.mxu0 %v422
        %432 = vmatprep.subr.bf16.mxu0 0
        %433 = vmatpush1.bf16.msra.mxu0 %v423
        %434 = vmatprep.subr.bf16.mxu0 0
        %435 = vmatpush1.bf16.msra.mxu0 0
        %436 = vmatprep.subr.bf16.mxu0 0
        %437 = vmatpush1.bf16.msra.mxu0 0
        %438 = vmatprep.subr.bf16.mxu0 0
        %439 = vmatpush1.bf16.msra.mxu0 0
        %440 = vmatprep.subr.bf16.mxu0 0
        %441 = vmatpush1.bf16.msra.mxu0 0
        %442 = vmatprep.subr.bf16.mxu0 0
        %443 = vmatpush1.bf16.msra.mxu0 0
        %444 = vmatprep.subr.bf16.mxu0 0
        %445 = vmatpush1.bf16.msra.mxu0 0
        %446 = vmatprep.subr.bf16.mxu0 0
        %447 = vmatpush1.bf16.msra.mxu0 0
        %448 = vmatprep.subr.bf16.mxu0 0
        %449 = vmatpush1.bf16.msra.mxu0 0
        %450 = vmatprep.subr.bf16.mxu0 0
        %451 = vmatpush1.bf16.msra.mxu0 0
        %452 = vmatprep.subr.bf16.mxu0 0
        %453 = vmatpush1.bf16.msra.mxu0 0
        %454 = vmatprep.subr.bf16.mxu0 0
        %455 = vmatpush1.bf16.msra.mxu0 0
        %456 = vmatprep.subr.bf16.mxu0 0
        %457 = vmatpush1.bf16.msra.mxu0 0
        %458 = vmatprep.subr.bf16.mxu0 0
        %459 = vmatpush1.bf16.msra.mxu0 0
        %460 = vmatprep.subr.bf16.mxu0 0
        %461 = vmatpush1.bf16.msra.mxu0 0
        %462 = vmatprep.mubr.bf16.mxu0 0
        %463 = vmatmul.mubr.bf16.gmra.mrb[0].mxu0 %v428
        %v464 = vpop.f32.mrb[0].mxu0
        %v465 = vadd.f32 0.0, %v464
        %v466 = vpop.f32.mrb[0].mxu0
        %v467 = vpop.f32.mrb[0].mxu0
        %v468 = vpop.f32.mrb[0].mxu0
        %469 = vdwg.mxu0
        %v470 = vld [vmem:[%s2] sm:$0xf]
        %v471 = vlaneseq
        %v472 = vshrl.u32 %v471, 7
        %vm473 = vcmp.lt.s32.totalorder %v472, 0
        %v474 = vsub.s32 0, %v472
        %v475 = vsel %vm473, %v474, %v472
        %v476 = vshrl.u32 %v475, 3
        %v477 = vand.u32 %v475, 7
        %v478 = vsub.s32 0, %v477
        %v479 = vsel %vm473, %v478, %v477
        %vm480 = vcmp.ne.s32.totalorder %v479, 0
        %vm481 = vcmp.lt.s32.totalorder %v479, 0
        %vm482 = vmand %vm481, %vm480
        %v483 = vadd.s32 %v479, 8
        %v484 = vsel %vm482, %v483, %v479
        %v485 = vlaneseq
        %v486 = vshrl.u32 %v485, 7
        %v487 = vsub.s32 3, %v486
        %v488 = vrot.slane %v470, %v487
        %v489 = vmul.f32 %v465, %v488
        %v490 = vld [vmem:[#allocation3] sm:$0x1]
        %v492 = vlaneseq
        %v493 = vshrl.u32 %v492, 7
        %v494 = vsub.s32 0, %v493
        %v495 = vrot.slane %v490, %v494
        %v497 = vadd.f32 %v489, %v495
        %v498 = vrot.slane %v465, 7
        %vm499 = vcmp.ge.s32.totalorder %v484, 1
        %v500 = vsel %vm499, %v498, 0.0
        %v501 = vlaneseq
        %v502 = vshrl.u32 %v501, 7
        %v503 = vsub.s32 2, %v502
        %v504 = vrot.slane %v470, %v503
        %v505 = vmul.f32 %v500, %v504
        %v506 = vadd.f32 %v497, %v505
        %v507 = vrot.slane %v465, 6
        %vm508 = vcmp.ge.s32.totalorder %v484, 2
        %v509 = vsel %vm508, %v507, 0.0
        %v510 = vlaneseq
        %v511 = vshrl.u32 %v510, 7
        %v512 = vsub.s32 1, %v511
        %v513 = vrot.slane %v470, %v512
        %v514 = vmul.f32 %v509, %v513
        %v515 = vadd.f32 %v506, %v514
        %v516 = vrot.slane %v465, 5
        %vm517 = vcmp.ge.s32.totalorder %v484, 3
        %v518 = vsel %vm517, %v516, 0.0
        %v519 = vlaneseq
        %v520 = vshrl.u32 %v519, 7
        %v521 = vsub.s32 0, %v520
        %v522 = vrot.slane %v470, %v521
        %v523 = vmul.f32 %v518, %v522
        %v524 = vadd.f32 %v515, %v523
        %v525 = vxor.u32 %v524, 2147483648
        %v526 = vmul.f32 %v525, 1.442695
        %v527 = vpow.pop %v526
        %v528 = vadd.f32 %v527, 1.0
        %v529 = vrcp.pop %v528
        %v530 = vmul.f32 1.0, %v529
        %v531 = vmul.f32 %v524, %v530
        %v532 = vld [vmem:[%s4] sm:$0xf]
        %v533 = vld [vmem:[%s4 + $0x4] sm:$0xf]
        %v534 = vld [vmem:[%s4 + $0x8] sm:$0xf]
        %v535 = vld [vmem:[%s4 + $0xc] sm:$0xf]
        %v536 = vld [vmem:[%s4 + $0x10] sm:$0xf]
        %v537 = vld [vmem:[%s4 + $0x14] sm:$0xf]
        %v538 = vld [vmem:[%s4 + $0x18] sm:$0xf]
        %v539 = vld [vmem:[%s4 + $0x1c] sm:$0xf]
        %v540 = vpack.c.bf16 %v531, %v531
        %v549 = vunpack.c.l.b16 %v532
        %v550 = vunpack.c.l.b16 %v533
        %v551 = vunpack.c.l.b16 %v534
        %v552 = vunpack.c.l.b16 %v535
        %v553 = vunpack.c.l.b16 %v536
        %v554 = vunpack.c.l.b16 %v537
        %v555 = vunpack.c.l.b16 %v538
        %v556 = vunpack.c.l.b16 %v539
        %v557 = vpack.c.b16 %v550, %v549
        %v558 = vpack.c.b16 %v552, %v551
        %v559 = vpack.c.b16 %v554, %v553
        %v560 = vpack.c.b16 %v556, %v555
        %vm565 = vcmask 523264
        %v567 = vsel %vm565, %v540, 0
        %569 = vmatprep.subr.bf16.mxu0 0
        %570 = vmatpush1.bf16.msra.mxu0 %v557
        %571 = vmatprep.subr.bf16.mxu0 0
        %572 = vmatpush1.bf16.msra.mxu0 %v558
        %573 = vmatprep.subr.bf16.mxu0 0
        %574 = vmatpush1.bf16.msra.mxu0 %v559
        %575 = vmatprep.subr.bf16.mxu0 0
        %576 = vmatpush1.bf16.msra.mxu0 %v560
        %577 = vmatprep.subr.bf16.mxu0 0
        %578 = vmatpush1.bf16.msra.mxu0 0
        %579 = vmatprep.subr.bf16.mxu0 0
        %580 = vmatpush1.bf16.msra.mxu0 0
        %581 = vmatprep.subr.bf16.mxu0 0
        %582 = vmatpush1.bf16.msra.mxu0 0
        %583 = vmatprep.subr.bf16.mxu0 0
        %584 = vmatpush1.bf16.msra.mxu0 0
        %585 = vmatprep.subr.bf16.mxu0 0
        %586 = vmatpush1.bf16.msra.mxu0 0
        %587 = vmatprep.subr.bf16.mxu0 0
        %588 = vmatpush1.bf16.msra.mxu0 0
        %589 = vmatprep.subr.bf16.mxu0 0
        %590 = vmatpush1.bf16.msra.mxu0 0
        %591 = vmatprep.subr.bf16.mxu0 0
        %592 = vmatpush1.bf16.msra.mxu0 0
        %593 = vmatprep.subr.bf16.mxu0 0
        %594 = vmatpush1.bf16.msra.mxu0 0
        %595 = vmatprep.subr.bf16.mxu0 0
        %596 = vmatpush1.bf16.msra.mxu0 0
        %597 = vmatprep.subr.bf16.mxu0 0
        %598 = vmatpush1.bf16.msra.mxu0 0
        %599 = vmatprep.subr.bf16.mxu0 0
        %600 = vmatpush1.bf16.msra.mxu0 0
        %601 = vmatprep.mubr.bf16.mxu0 0
        %602 = vmatmul.mubr.bf16.gmra.mrb[0].mxu0 %v567
        %v603 = vpop.f32.mrb[0].mxu0
        %v604 = vadd.f32 0.0, %v603
        %v605 = vpop.f32.mrb[0].mxu0
        %v606 = vpop.f32.mrb[0].mxu0
        %v607 = vpop.f32.mrb[0].mxu0
        %608 = vdwg.mxu0
        %v609 = vld [vmem:[%s5] sm:$0x3]
        %v610 = vld [vmem:[#allocation6] sm:$0x1]
        %612 = vset.pattern.permute.xlu0 0
        %613 = vperm.xlu0 %612, %v604
        %v614 = vpop.permute.xlu0 %613
        %v616 = vlaneseq
        %v617 = vshrl.u32 %v616, 7
        %v618 = vsub.s32 0, %v617
        %v619 = vrot.slane %v609, %v618
        %v620 = vmul.f32 %v614, %v619
        %621 = vset.pattern.permute.xlu0 1
        %622 = vperm.xlu0 %621, %v604
        %v623 = vpop.permute.xlu0 %622
        %v625 = vlaneseq
        %v626 = vshrl.u32 %v625, 7
        %v627 = vsub.s32 1, %v626
        %v628 = vrot.slane %v609, %v627
        %v629 = vmul.f32 %v623, %v628
        %v630 = vadd.f32 %v620, %v629
        %v632 = vlaneseq
        %v633 = vshrl.u32 %v632, 7
        %v634 = vsub.s32 0, %v633
        %v635 = vrot.slane %v610, %v634
        %v637 = vadd.f32 %v630, %v635
        %v638 = vmax.f32 %v637, 0.0
        %v639 = vand.u32 2147483647, %v637
        %v640 = vsub.f32 0.0, %v639
        %v641 = vmul.f32 %v640, 1.442695
        %v642 = vpow.pop %v641
        %v643 = vadd.f32 %v642, 1.0
        %v644 = vlog2.pop %v643
        %v645 = vmul.f32 %v644, 0.6931472
        %v646 = vadd.f32 %v638, %v645
        %647 = vxpose.xlu0.b32.start [1/16] %v604, 128
        %648 = vxpose.xlu0.b32.cont [2/16] 0.0, 128
        %649 = vxpose.xlu0.b32.cont [3/16] 0.0, 128
        %650 = vxpose.xlu0.b32.cont [4/16] 0.0, 128
        %651 = vxpose.xlu0.b32.cont [5/16] 0.0, 128
        %652 = vxpose.xlu0.b32.cont [6/16] 0.0, 128
        %653 = vxpose.xlu0.b32.cont [7/16] 0.0, 128
        %654 = vxpose.xlu0.b32.cont [8/16] 0.0, 128
        %655 = vxpose.xlu0.b32.cont [9/16] 0.0, 128
        %656 = vxpose.xlu0.b32.cont [10/16] 0.0, 128
        %657 = vxpose.xlu0.b32.cont [11/16] 0.0, 128
        %658 = vxpose.xlu0.b32.cont [12/16] 0.0, 128
        %659 = vxpose.xlu0.b32.cont [13/16] 0.0, 128
        %660 = vxpose.xlu0.b32.cont [14/16] 0.0, 128
        %661 = vxpose.xlu0.b32.cont [15/16] 0.0, 128
        %662 = vxpose.xlu0.b32.end [16/16] 0.0, 128
        %v663 = vpop.trf.xlu0
        %v664 = vpop.trf.xlu0
        %v665 = vpop.trf.xlu0
        %v666 = vpop.trf.xlu0
        %v667 = vpop.trf.xlu0
        %v668 = vpop.trf.xlu0
        %v669 = vpop.trf.xlu0
        %v670 = vpop.trf.xlu0
        %v671 = vpop.trf.xlu0
        %v672 = vpop.trf.xlu0
        %v673 = vpop.trf.xlu0
        %v674 = vpop.trf.xlu0
        %v675 = vpop.trf.xlu0
        %v676 = vpop.trf.xlu0
        %v677 = vpop.trf.xlu0
        %v678 = vpop.trf.xlu0
        %v679 = vld [vmem:[#allocation8] sm:$0xff]
        %v680 = vld [vmem:[#allocation8 + $0x8] sm:$0xff]
        %v681 = vmul.f32 %v646, %v531
        %v683 = vcombine.high %v646, %v646
        %v685 = vunpack.c.l.s4 1966171168
        %v686 = vunpack.c.0.s8 %v685
        %v687 = vlaneseq
        %v688 = vshrl.u32 %v687, 7
        %v689 = vsub.s32 %v686, %v688
        %v690 = vrot.slane %v646, %v689
        %v692 = vunpack.c.l.s4 1966171168
        %v693 = vunpack.c.0.s8 %v692
        %v694 = vlaneseq
        %v695 = vshrl.u32 %v694, 7
        %v696 = vsub.s32 %v693, %v695
        %v697 = vrot.slane %v683, %v696
        %v698 = vcombine.high %v690, %v690
        %v699 = vcombine.high %v697, %v697
        %v701 = vunpack.c.l.s4 1966171168
        %v702 = vunpack.c.0.s8 %v701
        %v703 = vlaneseq
        %v704 = vshrl.u32 %v703, 7
        %v705 = vsub.s32 %v702, %v704
        %v706 = vrot.slane %v690, %v705
        %v708 = vunpack.c.l.s4 1966171168
        %v709 = vunpack.c.0.s8 %v708
        %v710 = vlaneseq
        %v711 = vshrl.u32 %v710, 7
        %v712 = vsub.s32 %v709, %v711
        %v713 = vrot.slane %v697, %v712
        %v715 = vunpack.c.l.s4 1966171168
        %v716 = vunpack.c.0.s8 %v715
        %v717 = vlaneseq
        %v718 = vshrl.u32 %v717, 7
        %v719 = vsub.s32 %v716, %v718
        %v720 = vrot.slane %v698, %v719
        %v722 = vunpack.c.l.s4 1966171168
        %v723 = vunpack.c.0.s8 %v722
        %v724 = vlaneseq
        %v725 = vshrl.u32 %v724, 7
        %v726 = vsub.s32 %v723, %v725
        %v727 = vrot.slane %v699, %v726
        %v728 = vcombine.high %v706, %v706
        %v729 = vcombine.high %v713, %v713
        %v730 = vcombine.high %v720, %v720
        %v731 = vcombine.high %v727, %v727
        %v732 = vlaneseq
        %v733 = vshrl.u32 %v732, 7
        %v734 = vsub.s32 0, %v733
        %v735 = vrot.slane %v706, %v734
        %v736 = vlaneseq
        %v737 = vshrl.u32 %v736, 7
        %v738 = vsub.s32 0, %v737
        %v739 = vrot.slane %v720, %v738
        %v740 = vlaneseq
        %v741 = vshrl.u32 %v740, 7
        %v742 = vsub.s32 0, %v741
        %v743 = vrot.slane %v728, %v742
        %v744 = vlaneseq
        %v745 = vshrl.u32 %v744, 7
        %v746 = vsub.s32 0, %v745
        %v747 = vrot.slane %v730, %v746
        %v748 = vlaneseq
        %v749 = vshrl.u32 %v748, 7
        %v750 = vsub.s32 0, %v749
        %v751 = vrot.slane %v713, %v750
        %v752 = vlaneseq
        %v753 = vshrl.u32 %v752, 7
        %v754 = vsub.s32 0, %v753
        %v755 = vrot.slane %v727, %v754
        %v756 = vlaneseq
        %v757 = vshrl.u32 %v756, 7
        %v758 = vsub.s32 0, %v757
        %v759 = vrot.slane %v729, %v758
        %v760 = vlaneseq
        %v761 = vshrl.u32 %v760, 7
        %v762 = vsub.s32 0, %v761
        %v763 = vrot.slane %v731, %v762
        %v772 = vmul.f32 %v735, %v679
        %v773 = vmul.f32 %v735, %v680
        %v774 = vmul.f32 %v739, %v679
        %v775 = vmul.f32 %v739, %v680
        %v776 = vmul.f32 %v743, %v679
        %v777 = vmul.f32 %v743, %v680
        %v778 = vmul.f32 %v747, %v679
        %v779 = vmul.f32 %v747, %v680
        %v780 = vmul.f32 %v751, %v679
        %v781 = vmul.f32 %v751, %v680
        %v782 = vmul.f32 %v755, %v679
        %v783 = vmul.f32 %v755, %v680
        %v784 = vmul.f32 %v759, %v679
        %v785 = vmul.f32 %v759, %v680
        %v786 = vmul.f32 %v763, %v679
        %v787 = vmul.f32 %v763, %v680
        %v788 = vmul.f32 %v772, 1.442695
        %v789 = vpow.pop %v788
        %v790 = vmul.f32 %v773, 1.442695
        %v791 = vpow.pop %v790
        %v792 = vmul.f32 %v774, 1.442695
        %v793 = vpow.pop %v792
        %v794 = vmul.f32 %v775, 1.442695
        %v795 = vpow.pop %v794
        %v796 = vmul.f32 %v776, 1.442695
        %v797 = vpow.pop %v796
        %v798 = vmul.f32 %v777, 1.442695
        %v799 = vpow.pop %v798
        %v800 = vmul.f32 %v778, 1.442695
        %v801 = vpow.pop %v800
        %v802 = vmul.f32 %v779, 1.442695
        %v803 = vpow.pop %v802
        %v804 = vmul.f32 %v780, 1.442695
        %v805 = vpow.pop %v804
        %v806 = vmul.f32 %v781, 1.442695
        %v807 = vpow.pop %v806
        %v808 = vmul.f32 %v782, 1.442695
        %v809 = vpow.pop %v808
        %v810 = vmul.f32 %v783, 1.442695
        %v811 = vpow.pop %v810
        %v812 = vmul.f32 %v784, 1.442695
        %v813 = vpow.pop %v812
        %v814 = vmul.f32 %v785, 1.442695
        %v815 = vpow.pop %v814
        %v816 = vmul.f32 %v786, 1.442695
        %v817 = vpow.pop %v816
        %v818 = vmul.f32 %v787, 1.442695
        %v819 = vpow.pop %v818
        %v820 = vmul.f32 %v789, 0.0
        %v821 = vmul.f32 %v791, 0.0
        %v822 = vlaneseq
        %v823 = vshrl.u32 %v822, 7
        %v824 = vsub.s32 0, %v823
        %v825 = vrot.slane %v681, %v824
        %827 = vset.pattern.permute.xlu0 0
        %828 = vperm.xlu0 %827, %v663
        %v829 = vpop.permute.xlu0 %828
        %832 = vset.pattern.permute.xlu0 0
        %833 = vperm.xlu0 %832, %v664
        %v834 = vpop.permute.xlu0 %833
        %837 = vset.pattern.permute.xlu0 0
        %838 = vperm.xlu0 %837, %v665
        %v839 = vpop.permute.xlu0 %838
        %v841 = vmul.f32 %v825, %v829
        %v842 = vmul.f32 %v825, %v834
        %v843 = vmul.f32 %v825, %v839
        %vm847 = vcmask 1045504
        %v848 = vrot.slane %v841, 2
        %v849 = vrot.slane %v842, 2
        %v850 = vsel %vm847, %v848, %v849
        %v851 = vrot.slane %v843, 2
        %v852 = vsel %vm847, %v849, %v851
        %v855 = vadd.f32 %v820, %v850
        %v856 = vadd.f32 %v821, %v852
        %858 = vset.pattern.permute.xlu0 0
        %859 = vperm.xlu0 %858, %v666
        %v860 = vpop.permute.xlu0 %859
        %862 = vset.pattern.permute.xlu0 0
        %863 = vperm.xlu0 %862, %v667
        %v864 = vpop.permute.xlu0 %863
        %v865 = vrot.slane %v839, 2
        %v866 = vrot.slane %v860, 2
        %v867 = vsel %vm847, %v865, %v866
        %v868 = vrot.slane %v864, 2
        %v869 = vsel %vm847, %v866, %v868
        %v872 = vmul.f32 %v855, %v867
        %v873 = vmul.f32 %v856, %v869
        %v874 = vsel %vm565, %v872, 0.0
        %v875 = vsel %vm565, %v873, 0.0
        %v876 = vadd.f32 %v874, %v875
        %v877 = vrot.slane %v876, 4
        %v878 = vadd.f32 %v876, %v877
        %v879 = vrot.slane %v878, 2
        %v880 = vadd.f32 %v878, %v879
        %v881 = vrot.slane %v880, 1
        %v882 = vadd.f32 %v880, %v881
        %vm883 = vcmask 516096
        %884 = vst.msk [vmem:[#allocation2] sm:$0x1] %vm883, %v882
        %v885 = vmul.f32 %v793, %v855
        %v886 = vmul.f32 %v795, %v856
        %v887 = vlaneseq
        %v888 = vshrl.u32 %v887, 7
        %v889 = vsub.s32 1, %v888
        %v890 = vrot.slane %v681, %v889
        %891 = vset.pattern.permute.xlu0 1
        %892 = vperm.xlu0 %891, %v663
        %v893 = vpop.permute.xlu0 %892
        %895 = vset.pattern.permute.xlu0 1
        %896 = vperm.xlu0 %895, %v664
        %v897 = vpop.permute.xlu0 %896
        %899 = vset.pattern.permute.xlu0 1
        %900 = vperm.xlu0 %899, %v665
        %v901 = vpop.permute.xlu0 %900
        %v903 = vmul.f32 %v890, %v893
        %v904 = vmul.f32 %v890, %v897
        %v905 = vmul.f32 %v890, %v901
        %v909 = vrot.slane %v903, 2
        %v910 = vrot.slane %v904, 2
        %v911 = vsel %vm847, %v909, %v910
        %v912 = vrot.slane %v905, 2
        %v913 = vsel %vm847, %v910, %v912
        %v916 = vadd.f32 %v885, %v911
        %v917 = vadd.f32 %v886, %v913
        %918 = vset.pattern.permute.xlu0 1
        %919 = vperm.xlu0 %918, %v666
        %v920 = vpop.permute.xlu0 %919
        %921 = vset.pattern.permute.xlu0 1
        %922 = vperm.xlu0 %921, %v667
        %v923 = vpop.permute.xlu0 %922
        %v924 = vrot.slane %v901, 2
        %v925 = vrot.slane %v920, 2
        %v926 = vsel %vm847, %v924, %v925
        %v927 = vrot.slane %v923, 2
        %v928 = vsel %vm847, %v925, %v927
        %v931 = vmul.f32 %v916, %v926
        %v932 = vmul.f32 %v917, %v928
        %v933 = vsel %vm565, %v931, 0.0
        %v934 = vsel %vm565, %v932, 0.0
        %v935 = vadd.f32 %v933, %v934
        %v936 = vrot.slane %v935, 4
        %v937 = vadd.f32 %v935, %v936
        %v938 = vrot.slane %v937, 2
        %v939 = vadd.f32 %v937, %v938
        %v940 = vrot.slane %v939, 1
        %v941 = vadd.f32 %v939, %v940
        %942 = vst.msk [vmem:[#allocation2 + $0x1] sm:$0x1] %vm883, %v941
        %v943 = vmul.f32 %v797, %v916
        %v944 = vmul.f32 %v799, %v917
        %v945 = vlaneseq
        %v946 = vshrl.u32 %v945, 7
        %v947 = vsub.s32 2, %v946
        %v948 = vrot.slane %v681, %v947
        %949 = vset.pattern.permute.xlu0 2
        %950 = vperm.xlu0 %949, %v663
        %v951 = vpop.permute.xlu0 %950
        %953 = vset.pattern.permute.xlu0 2
        %954 = vperm.xlu0 %953, %v664
        %v955 = vpop.permute.xlu0 %954
        %957 = vset.pattern.permute.xlu0 2
        %958 = vperm.xlu0 %957, %v665
        %v959 = vpop.permute.xlu0 %958
        %v961 = vmul.f32 %v948, %v951
        %v962 = vmul.f32 %v948, %v955
        %v963 = vmul.f32 %v948, %v959
        %v967 = vrot.slane %v961, 2
        %v968 = vrot.slane %v962, 2
        %v969 = vsel %vm847, %v967, %v968
        %v970 = vrot.slane %v963, 2
        %v971 = vsel %vm847, %v968, %v970
        %v974 = vadd.f32 %v943, %v969
        %v975 = vadd.f32 %v944, %v971
        %976 = vset.pattern.permute.xlu0 2
        %977 = vperm.xlu0 %976, %v666
        %v978 = vpop.permute.xlu0 %977
        %979 = vset.pattern.permute.xlu0 2
        %980 = vperm.xlu0 %979, %v667
        %v981 = vpop.permute.xlu0 %980
        %v982 = vrot.slane %v959, 2
        %v983 = vrot.slane %v978, 2
        %v984 = vsel %vm847, %v982, %v983
        %v985 = vrot.slane %v981, 2
        %v986 = vsel %vm847, %v983, %v985
        %v989 = vmul.f32 %v974, %v984
        %v990 = vmul.f32 %v975, %v986
        %v991 = vsel %vm565, %v989, 0.0
        %v992 = vsel %vm565, %v990, 0.0
        %v993 = vadd.f32 %v991, %v992
        %v994 = vrot.slane %v993, 4
        %v995 = vadd.f32 %v993, %v994
        %v996 = vrot.slane %v995, 2
        %v997 = vadd.f32 %v995, %v996
        %v998 = vrot.slane %v997, 1
        %v999 = vadd.f32 %v997, %v998
        %1000 = vst.msk [vmem:[#allocation2 + $0x2] sm:$0x1] %vm883, %v999
        %v1001 = vmul.f32 %v801, %v974
        %v1002 = vmul.f32 %v803, %v975
        %v1003 = vlaneseq
        %v1004 = vshrl.u32 %v1003, 7
        %v1005 = vsub.s32 3, %v1004
        %v1006 = vrot.slane %v681, %v1005
        %1007 = vset.pattern.permute.xlu0 3
        %1008 = vperm.xlu0 %1007, %v663
        %v1009 = vpop.permute.xlu0 %1008
        %1011 = vset.pattern.permute.xlu0 3
        %1012 = vperm.xlu0 %1011, %v664
        %v1013 = vpop.permute.xlu0 %1012
        %1015 = vset.pattern.permute.xlu0 3
        %1016 = vperm.xlu0 %1015, %v665
        %v1017 = vpop.permute.xlu0 %1016
        %v1019 = vmul.f32 %v1006, %v1009
        %v1020 = vmul.f32 %v1006, %v1013
        %v1021 = vmul.f32 %v1006, %v1017
        %v1025 = vrot.slane %v1019, 2
        %v1026 = vrot.slane %v1020, 2
        %v1027 = vsel %vm847, %v1025, %v1026
        %v1028 = vrot.slane %v1021, 2
        %v1029 = vsel %vm847, %v1026, %v1028
        %v1032 = vadd.f32 %v1001, %v1027
        %v1033 = vadd.f32 %v1002, %v1029
        %1034 = vset.pattern.permute.xlu0 3
        %1035 = vperm.xlu0 %1034, %v666
        %v1036 = vpop.permute.xlu0 %1035
        %1037 = vset.pattern.permute.xlu0 3
        %1038 = vperm.xlu0 %1037, %v667
        %v1039 = vpop.permute.xlu0 %1038
        %v1040 = vrot.slane %v1017, 2
        %v1041 = vrot.slane %v1036, 2
        %v1042 = vsel %vm847, %v1040, %v1041
        %v1043 = vrot.slane %v1039, 2
        %v1044 = vsel %vm847, %v1041, %v1043
        %v1047 = vmul.f32 %v1032, %v1042
        %v1048 = vmul.f32 %v1033, %v1044
        %v1049 = vsel %vm565, %v1047, 0.0
        %v1050 = vsel %vm565, %v1048, 0.0
        %v1051 = vadd.f32 %v1049, %v1050
        %v1052 = vrot.slane %v1051, 4
        %v1053 = vadd.f32 %v1051, %v1052
        %v1054 = vrot.slane %v1053, 2
        %v1055 = vadd.f32 %v1053, %v1054
        %v1056 = vrot.slane %v1055, 1
        %v1057 = vadd.f32 %v1055, %v1056
        %1058 = vst.msk [vmem:[#allocation2 + $0x3] sm:$0x1] %vm883, %v1057
        %v1059 = vmul.f32 %v805, %v1032
        %v1060 = vmul.f32 %v807, %v1033
        %v1061 = vlaneseq
        %v1062 = vshrl.u32 %v1061, 7
        %v1063 = vsub.s32 4, %v1062
        %v1064 = vrot.slane %v681, %v1063
        %1065 = vset.pattern.permute.xlu0 4
        %1066 = vperm.xlu0 %1065, %v663
        %v1067 = vpop.permute.xlu0 %1066
        %1069 = vset.pattern.permute.xlu0 4
        %1070 = vperm.xlu0 %1069, %v664
        %v1071 = vpop.permute.xlu0 %1070
        %1073 = vset.pattern.permute.xlu0 4
        %1074 = vperm.xlu0 %1073, %v665
        %v1075 = vpop.permute.xlu0 %1074
        %v1077 = vmul.f32 %v1064, %v1067
        %v1078 = vmul.f32 %v1064, %v1071
        %v1079 = vmul.f32 %v1064, %v1075
        %v1083 = vrot.slane %v1077, 2
        %v1084 = vrot.slane %v1078, 2
        %v1085 = vsel %vm847, %v1083, %v1084
        %v1086 = vrot.slane %v1079, 2
        %v1087 = vsel %vm847, %v1084, %v1086
        %v1090 = vadd.f32 %v1059, %v1085
        %v1091 = vadd.f32 %v1060, %v1087
        %1092 = vset.pattern.permute.xlu0 4
        %1093 = vperm.xlu0 %1092, %v666
        %v1094 = vpop.permute.xlu0 %1093
        %1095 = vset.pattern.permute.xlu0 4
        %1096 = vperm.xlu0 %1095, %v667
        %v1097 = vpop.permute.xlu0 %1096
        %v1098 = vrot.slane %v1075, 2
        %v1099 = vrot.slane %v1094, 2
        %v1100 = vsel %vm847, %v1098, %v1099
        %v1101 = vrot.slane %v1097, 2
        %v1102 = vsel %vm847, %v1099, %v1101
        %v1105 = vmul.f32 %v1090, %v1100
        %v1106 = vmul.f32 %v1091, %v1102
        %v1107 = vsel %vm565, %v1105, 0.0
        %v1108 = vsel %vm565, %v1106, 0.0
        %v1109 = vadd.f32 %v1107, %v1108
        %v1110 = vrot.slane %v1109, 4
        %v1111 = vadd.f32 %v1109, %v1110
        %v1112 = vrot.slane %v1111, 2
        %v1113 = vadd.f32 %v1111, %v1112
        %v1114 = vrot.slane %v1113, 1
        %v1115 = vadd.f32 %v1113, %v1114
        %1116 = vst.msk [vmem:[#allocation2 + $0x4] sm:$0x1] %vm883, %v1115
        %v1117 = vmul.f32 %v809, %v1090
        %v1118 = vmul.f32 %v811, %v1091
        %v1119 = vlaneseq
        %v1120 = vshrl.u32 %v1119, 7
        %v1121 = vsub.s32 5, %v1120
        %v1122 = vrot.slane %v681, %v1121
        %1123 = vset.pattern.permute.xlu0 5
        %1124 = vperm.xlu0 %1123, %v663
        %v1125 = vpop.permute.xlu0 %1124
        %1127 = vset.pattern.permute.xlu0 5
        %1128 = vperm.xlu0 %1127, %v664
        %v1129 = vpop.permute.xlu0 %1128
        %1131 = vset.pattern.permute.xlu0 5
        %1132 = vperm.xlu0 %1131, %v665
        %v1133 = vpop.permute.xlu0 %1132
        %v1135 = vmul.f32 %v1122, %v1125
        %v1136 = vmul.f32 %v1122, %v1129
        %v1137 = vmul.f32 %v1122, %v1133
        %v1141 = vrot.slane %v1135, 2
        %v1142 = vrot.slane %v1136, 2
        %v1143 = vsel %vm847, %v1141, %v1142
        %v1144 = vrot.slane %v1137, 2
        %v1145 = vsel %vm847, %v1142, %v1144
        %v1148 = vadd.f32 %v1117, %v1143
        %v1149 = vadd.f32 %v1118, %v1145
        %1150 = vset.pattern.permute.xlu0 5
        %1151 = vperm.xlu0 %1150, %v666
        %v1152 = vpop.permute.xlu0 %1151
        %1153 = vset.pattern.permute.xlu0 5
        %1154 = vperm.xlu0 %1153, %v667
        %v1155 = vpop.permute.xlu0 %1154
        %v1156 = vrot.slane %v1133, 2
        %v1157 = vrot.slane %v1152, 2
        %v1158 = vsel %vm847, %v1156, %v1157
        %v1159 = vrot.slane %v1155, 2
        %v1160 = vsel %vm847, %v1157, %v1159
        %v1163 = vmul.f32 %v1148, %v1158
        %v1164 = vmul.f32 %v1149, %v1160
        %v1165 = vsel %vm565, %v1163, 0.0
        %v1166 = vsel %vm565, %v1164, 0.0
        %v1167 = vadd.f32 %v1165, %v1166
        %v1168 = vrot.slane %v1167, 4
        %v1169 = vadd.f32 %v1167, %v1168
        %v1170 = vrot.slane %v1169, 2
        %v1171 = vadd.f32 %v1169, %v1170
        %v1172 = vrot.slane %v1171, 1
        %v1173 = vadd.f32 %v1171, %v1172
        %1174 = vst.msk [vmem:[#allocation2 + $0x5] sm:$0x1] %vm883, %v1173
        %v1175 = vmul.f32 %v813, %v1148
        %v1176 = vmul.f32 %v815, %v1149
        %v1177 = vlaneseq
        %v1178 = vshrl.u32 %v1177, 7
        %v1179 = vsub.s32 6, %v1178
        %v1180 = vrot.slane %v681, %v1179
        %1181 = vset.pattern.permute.xlu0 6
        %1182 = vperm.xlu0 %1181, %v663
        %v1183 = vpop.permute.xlu0 %1182
        %1185 = vset.pattern.permute.xlu0 6
        %1186 = vperm.xlu0 %1185, %v664
        %v1187 = vpop.permute.xlu0 %1186
        %1189 = vset.pattern.permute.xlu0 6
        %1190 = vperm.xlu0 %1189, %v665
        %v1191 = vpop.permute.xlu0 %1190
        %v1193 = vmul.f32 %v1180, %v1183
        %v1194 = vmul.f32 %v1180, %v1187
        %v1195 = vmul.f32 %v1180, %v1191
        %v1199 = vrot.slane %v1193, 2
        %v1200 = vrot.slane %v1194, 2
        %v1201 = vsel %vm847, %v1199, %v1200
        %v1202 = vrot.slane %v1195, 2
        %v1203 = vsel %vm847, %v1200, %v1202
        %v1206 = vadd.f32 %v1175, %v1201
        %v1207 = vadd.f32 %v1176, %v1203
        %1208 = vset.pattern.permute.xlu0 6
        %1209 = vperm.xlu0 %1208, %v666
        %v1210 = vpop.permute.xlu0 %1209
        %1211 = vset.pattern.permute.xlu0 6
        %1212 = vperm.xlu0 %1211, %v667
        %v1213 = vpop.permute.xlu0 %1212
        %v1214 = vrot.slane %v1191, 2
        %v1215 = vrot.slane %v1210, 2
        %v1216 = vsel %vm847, %v1214, %v1215
        %v1217 = vrot.slane %v1213, 2
        %v1218 = vsel %vm847, %v1215, %v1217
        %v1221 = vmul.f32 %v1206, %v1216
        %v1222 = vmul.f32 %v1207, %v1218
        %v1223 = vsel %vm565, %v1221, 0.0
        %v1224 = vsel %vm565, %v1222, 0.0
        %v1225 = vadd.f32 %v1223, %v1224
        %v1226 = vrot.slane %v1225, 4
        %v1227 = vadd.f32 %v1225, %v1226
        %v1228 = vrot.slane %v1227, 2
        %v1229 = vadd.f32 %v1227, %v1228
        %v1230 = vrot.slane %v1229, 1
        %v1231 = vadd.f32 %v1229, %v1230
        %1232 = vst.msk [vmem:[#allocation2 + $0x6] sm:$0x1] %vm883, %v1231
        %v1233 = vmul.f32 %v817, %v1206
        %v1234 = vmul.f32 %v819, %v1207
        %v1235 = vlaneseq
        %v1236 = vshrl.u32 %v1235, 7
        %v1237 = vsub.s32 7, %v1236
        %v1238 = vrot.slane %v681, %v1237
        %1239 = vset.pattern.permute.xlu0 7
        %1240 = vperm.xlu0 %1239, %v663
        %v1241 = vpop.permute.xlu0 %1240
        %1243 = vset.pattern.permute.xlu0 7
        %1244 = vperm.xlu0 %1243, %v664
        %v1245 = vpop.permute.xlu0 %1244
        %1247 = vset.pattern.permute.xlu0 7
        %1248 = vperm.xlu0 %1247, %v665
        %v1249 = vpop.permute.xlu0 %1248
        %v1251 = vmul.f32 %v1238, %v1241
        %v1252 = vmul.f32 %v1238, %v1245
        %v1253 = vmul.f32 %v1238, %v1249
        %v1257 = vrot.slane %v1251, 2
        %v1258 = vrot.slane %v1252, 2
        %v1259 = vsel %vm847, %v1257, %v1258
        %v1260 = vrot.slane %v1253, 2
        %v1261 = vsel %vm847, %v1258, %v1260
        %v1264 = vadd.f32 %v1233, %v1259
        %v1265 = vadd.f32 %v1234, %v1261
        %1266 = vset.pattern.permute.xlu0 7
        %1267 = vperm.xlu0 %1266, %v666
        %v1268 = vpop.permute.xlu0 %1267
        %1269 = vset.pattern.permute.xlu0 7
        %1270 = vperm.xlu0 %1269, %v667
        %v1271 = vpop.permute.xlu0 %1270
        %v1272 = vrot.slane %v1249, 2
        %v1273 = vrot.slane %v1268, 2
        %v1274 = vsel %vm847, %v1272, %v1273
        %v1275 = vrot.slane %v1271, 2
        %v1276 = vsel %vm847, %v1273, %v1275
        %v1279 = vmul.f32 %v1264, %v1274
        %v1280 = vmul.f32 %v1265, %v1276
        %v1281 = vsel %vm565, %v1279, 0.0
        %v1282 = vsel %vm565, %v1280, 0.0
        %v1283 = vadd.f32 %v1281, %v1282
        %v1284 = vrot.slane %v1283, 4
        %v1285 = vadd.f32 %v1283, %v1284
        %v1286 = vrot.slane %v1285, 2
        %v1287 = vadd.f32 %v1285, %v1286
        %v1288 = vrot.slane %v1287, 1
        %v1289 = vadd.f32 %v1287, %v1288
        %1290 = vst.msk [vmem:[#allocation2 + $0x7] sm:$0x1] %vm883, %v1289
        %v1291 = vld [vmem:[#allocation2] sm:$0xff]
        %v1292 = vld [vmem:[#allocation9] sm:$0x1]
        %v1294 = vlaneseq
        %v1295 = vshrl.u32 %v1294, 7
        %v1296 = vsub.s32 0, %v1295
        %v1297 = vrot.slane %v1292, %v1296
        %v1299 = vmul.f32 %v531, %v1297
        %v1300 = vadd.f32 %v1291, %v1299
        %v1301 = vxor.u32 %v465, 2147483648
        %v1302 = vmul.f32 %v1301, 1.442695
        %v1303 = vpow.pop %v1302
        %v1304 = vadd.f32 %v1303, 1.0
        %v1305 = vrcp.pop %v1304
        %v1306 = vmul.f32 1.0, %v1305
        %v1307 = vmul.f32 %v465, %v1306
        %1309 = vrot.lane.b32.xlu0 %v1307, 64
        %v1310 = vpop.permute.xlu0 %1309
        %v1312 = vmul.f32 %v1300, %v1310
        %v1313 = vld [vmem:[%s9] sm:$0xf]
        %v1314 = vld [vmem:[%s9 + $0x4] sm:$0xf]
        %v1315 = vld [vmem:[%s9 + $0x8] sm:$0xf]
        %v1316 = vld [vmem:[%s9 + $0xc] sm:$0xf]
        %v1317 = vld [vmem:[%s9 + $0x10] sm:$0xf]
        %v1318 = vld [vmem:[%s9 + $0x14] sm:$0xf]
        %v1319 = vld [vmem:[%s9 + $0x18] sm:$0xf]
        %v1320 = vld [vmem:[%s9 + $0x1c] sm:$0xf]
        %v1321 = vpack.c.bf16 %v1312, %v1312
        %v1330 = vunpack.c.l.b16 %v1313
        %v1331 = vunpack.c.l.b16 %v1314
        %v1332 = vunpack.c.l.b16 %v1315
        %v1333 = vunpack.c.l.b16 %v1316
        %v1334 = vunpack.c.l.b16 %v1317
        %v1335 = vunpack.c.l.b16 %v1318
        %v1336 = vunpack.c.l.b16 %v1319
        %v1337 = vunpack.c.l.b16 %v1320
        %v1338 = vpack.c.b16 %v1331, %v1330
        %v1339 = vpack.c.b16 %v1333, %v1332
        %v1340 = vpack.c.b16 %v1335, %v1334
        %v1341 = vpack.c.b16 %v1337, %v1336
        %v1347 = vsel %vm565, %v1321, 0
        %1349 = vmatprep.subr.bf16.mxu0 0
        %1350 = vmatpush1.bf16.msra.mxu0 %v1338
        %1351 = vmatprep.subr.bf16.mxu0 0
        %1352 = vmatpush1.bf16.msra.mxu0 %v1339
        %1353 = vmatprep.subr.bf16.mxu0 0
        %1354 = vmatpush1.bf16.msra.mxu0 %v1340
        %1355 = vmatprep.subr.bf16.mxu0 0
        %1356 = vmatpush1.bf16.msra.mxu0 %v1341
        %1357 = vmatprep.subr.bf16.mxu0 0
        %1358 = vmatpush1.bf16.msra.mxu0 0
        %1359 = vmatprep.subr.bf16.mxu0 0
        %1360 = vmatpush1.bf16.msra.mxu0 0
        %1361 = vmatprep.subr.bf16.mxu0 0
        %1362 = vmatpush1.bf16.msra.mxu0 0
        %1363 = vmatprep.subr.bf16.mxu0 0
        %1364 = vmatpush1.bf16.msra.mxu0 0
        %1365 = vmatprep.subr.bf16.mxu0 0
        %1366 = vmatpush1.bf16.msra.mxu0 0
        %1367 = vmatprep.subr.bf16.mxu0 0
        %1368 = vmatpush1.bf16.msra.mxu0 0
        %1369 = vmatprep.subr.bf16.mxu0 0
        %1370 = vmatpush1.bf16.msra.mxu0 0
        %1371 = vmatprep.subr.bf16.mxu0 0
        %1372 = vmatpush1.bf16.msra.mxu0 0
        %1373 = vmatprep.subr.bf16.mxu0 0
        %1374 = vmatpush1.bf16.msra.mxu0 0
        %1375 = vmatprep.subr.bf16.mxu0 0
        %1376 = vmatpush1.bf16.msra.mxu0 0
        %1377 = vmatprep.subr.bf16.mxu0 0
        %1378 = vmatpush1.bf16.msra.mxu0 0
        %1379 = vmatprep.subr.bf16.mxu0 0
        %1380 = vmatpush1.bf16.msra.mxu0 0
        %1381 = vmatprep.mubr.bf16.mxu0 0
        %1382 = vmatmul.mubr.bf16.gmra.mrb[0].mxu0 %v1347
        %v1383 = vpop.f32.mrb[0].mxu0
        %v1384 = vadd.f32 0.0, %v1383
        %v1385 = vpop.f32.mrb[0].mxu0
        %v1386 = vpop.f32.mrb[0].mxu0
        %v1387 = vpop.f32.mrb[0].mxu0
        %1388 = vdwg.mxu0
        %1389 = vst.msk [vmem:[%s403] sm:$0xff] %vm426, %v1384
        %s1390 = sand.u32 %s250, 1
        %s1391 = scalar_lea.sflag [#allocation5], %s1390
        %s1392 = sand.u32 %s250, 1
        %s1393 = smul.addr %s1392, 8
        %s1394 = scalar_lea.vmem [#allocation11], %s1393
        // Predicated region
        $region77: #{tpu_custom_call.1} parent=59 // pred_check
          %p1395 = pneg %p260
        $region78: #{tpu_custom_call.1} parent=59 // pred_check_branch
          %1397 = sbr.rel (%p1395) target = $region80
        $region79: #{tpu_custom_call.1} parent=59 // pred_region
          %s1399 = ssub.s32 128, 128
          %1400 = vsyncadd %s1391, %s1399
          %s1401 = smul.addr %s27, 128
          %s1402 = scalar_lea.hbm %s10, %s1401
          %s1404 = sshll.u32 %s1394, 4
          %s1405 = int_to_ptr.vmem [resolvable:$true] %s1404
          %1407 = dma.vmem_to_hbm [thread:$0]  %s1405, 128, %s1402, %s1391
        $region80: #{tpu_custom_call.1} parent=59 // pred_fallthru
          _
      $region60: #{tpu_custom_call.1} parent=5 // pred_fallthru
        _
      %p1408 = scmp.le.s32.totalorder 2, %s22
      // Predicated region
      $region81: #{tpu_custom_call.1} parent=5 // pred_check
        %p1409 = pneg %p1408
      $region82: #{tpu_custom_call.1} parent=5 // pred_check_branch
        %1411 = sbr.rel (%p1409) target = $region84
      $region83: #{tpu_custom_call.1} parent=5 // pred_region
        %s1412 = ssub.s32 %s22, 2
        // Predicated region
        $region85: #{tpu_custom_call.1} parent=83 // pred_check
          %p1413 = pneg %p266
        $region86: #{tpu_custom_call.1} parent=83 // pred_check_branch
          %1415 = sbr.rel (%p1413) target = $region88
        $region87: #{tpu_custom_call.1} parent=83 // pred_region
          %s1416 = sand.u32 %s251, 1
          %s1417 = scalar_lea.sflag [#allocation5], %s1416
          %s1418 = sand.u32 %s251, 1
          %s1419 = smul.addr %s1418, 8
          %s1420 = scalar_lea.vmem [#allocation11], %s1419
          %1421 = dma.done %s1417, 128
        $region88: #{tpu_custom_call.1} parent=83 // pred_fallthru
          _
      $region84: #{tpu_custom_call.1} parent=5 // pred_fallthru
        _
    $region6: #{tpu_custom_call.1} parent=1 // loop_footer
      %s26 = sadd.s32 1, %s22
    $region7: #{tpu_custom_call.1} parent=1 // loop_footer_branch
      %21 = sbr.rel target = $region3
    $region8: #{tpu_custom_call.1} parent=1 // loop_exit
      _
    %1422 = vsyncpa [#allocation4], 1
    %s1423 = scalar_lea.sflag [#allocation4], 1
    %1424 = vsyncpa %s1423, 1
    %1425 = vsyncpa [#allocation7], 1
    %1426 = vsyncpa [#allocation10], 1
    %1427 = vsyncpa [#allocation5], 1
    %s1428 = scalar_lea.sflag [#allocation5], 1
    %1429 = vsyncpa %s1428, 1

</llo_original>
